<compile_context>
chip_gen: v6e
topology: v6e:2x2x1
jax: 0.10.0
libtpu: 0.0.40
codegen_flags: <defaults>
</compile_context>

<pallas_src>
import functools

import jax
import jax.numpy as jnp
from jax import lax
from jax.experimental import pallas as pl
from jax.experimental.pallas import tpu as pltpu

HR = 16  # halo-slab rows: one packed (16,128) tile; supports kernel sizes up to 2*HR+1


def conv1dblock_kernel(xm_ref, xl_ref, xr_ref, w1_ref, t1_ref, w2_ref, t2_ref,
                       wres_ref, out_ref, *, L, TL, K, P):
    # xm_ref   : (TL, C_in_p)         x rows [t*TL, (t+1)*TL)
    # xl_ref   : (HR, C_in_p)         x rows [t*TL-HR, t*TL)      (garbage for t==0 -> zeroed)
    # xr_ref   : (HR, C_in_p)         x rows [(t+1)*TL, (t+1)*TL+HR)
    # w1_ref   : (K, C_in_p, C_out_p)   conv1 weight, BN1 scale folded in
    # w2_ref   : (K, C_out_p, C_out_p)  conv2 weight, BN2 scale folded in
    # wres_ref : (C_in_p, C_out_p)      residual projection
    # t1/t2    : (1, C_out_p)           BN shift + scaled conv bias (f32)
    # out_ref  : (TL, C_out_p)
    t = pl.program_id(1)
    TL2P = TL + 2 * P                 # conv1 rows needed by conv2 (incl. halo)
    o = HR - 2 * P                    # window row of the first x row conv1 needs

    xm = xm_ref[...]
    xl = xl_ref[...]
    left = jnp.where(t > 0, xl, jnp.zeros_like(xl))      # t==0: rows < 0 are conv1 zero padding
    # Stitched window: row g <-> global x row t*TL - HR + g.  All pieces are 16-row aligned.
    xwin = jnp.concatenate([left, xm, xr_ref[...]], axis=0)          # (TL + 2*HR, C_in_p)

    # ---- Conv1: K accumulating MXU matmuls (BN1 scale already folded into w1) ----
    acc1 = jnp.dot(xwin[o:o + TL2P, :], w1_ref[0], preferred_element_type=jnp.float32)
    for k in range(1, K):
        acc1 = acc1 + jnp.dot(xwin[o + k:o + k + TL2P, :], w1_ref[k],
                              preferred_element_type=jnp.float32)

    # dropout(identity, eval) + BN1 shift(+bias) + ReLU
    h = jnp.maximum(acc1 + t1_ref[...], 0.0)

    # Zero h rows whose global index lies outside [0, L): those rows are conv2's zero padding
    # (and the rounded-up tail), NOT conv1 applied to zero-padded x.
    g = t * TL - P + lax.broadcasted_iota(jnp.int32, (TL2P, 1), 0)
    h = jnp.where((g >= 0) & (g < L), h, 0.0).astype(xm.dtype)

    # ---- Conv2: K accumulating MXU matmuls ----
    acc2 = jnp.dot(h[0:TL, :], w2_ref[0], preferred_element_type=jnp.float32)
    for k in range(1, K):
        acc2 = acc2 + jnp.dot(h[k:k + TL, :], w2_ref[k], preferred_element_type=jnp.float32)
    h2 = jnp.maximum(acc2 + t2_ref[...], 0.0)

    # ---- residual projection on the raw main rows (same block, no extra HBM stream) ----
    res = jnp.dot(xm, wres_ref[...], preferred_element_type=jnp.float32)

    out_ref[...] = (h2 + res).astype(out_ref.dtype)


def conv1dblock_forward(x_ncl, params, *, kersize=3, stride=1, padding=1, eps=1e-5,
                        tile_l=1024, compute_dtype=jnp.bfloat16, out_dtype=None,
                        return_channels_last=False):
    # Residual add requires same output length, so stride=1 and "same" padding.
    assert stride == 1 and padding == (kersize - 1) // 2
    B, C_in, L = x_ncl.shape
    C_out = params['w1'].shape[0]
    K, P = kersize, padding
    assert 2 * P <= HR, "halo slab (16 rows) covers kernel sizes up to 33"
    out_dtype = x_ncl.dtype if out_dtype is None else out_dtype

    rnd = lambda v, m: (v + m - 1) // m * m
    C_in_p = rnd(C_in, 128)                   # lane-dense channels (zero-padded lanes)
    C_out_p = rnd(C_out, 128)
    TL = min(rnd(tile_l, HR), rnd(L, HR))     # L tile, multiple of 16 (halo-slab alignment)
    Lp = rnd(L, TL)                           # length rounded to whole tiles
    NT = Lp // TL
    nb = TL // HR                             # 16-row blocks per tile (for halo index maps)

    # ---- channels-last input, padded ONCE: rows [L, Lp+HR) zero, lanes [C_in, C_in_p) zero ----
    x_blc = jnp.transpose(x_ncl, (0, 2, 1)).astype(compute_dtype)             # (B, L, C_in)
    x_pad = jnp.pad(x_blc, ((0, 0), (0, Lp + HR - L), (0, C_in_p - C_in)))    # (B, Lp+HR, C_in_p)

    # ---- fold conv bias + BN(running stats): scale -> conv weight, shift -> (1, C_out_p) f32 ----
    def fold(gamma, beta, mean, var, bias):
        scale = gamma / jnp.sqrt(var + eps)
        shift = beta - mean * scale + bias * scale            # conv bias absorbed here
        shift = jnp.pad(shift, (0, C_out_p - C_out)).reshape(1, C_out_p).astype(jnp.float32)
        return scale, shift

    s1, t1 = fold(params['g1'], params['be1'], params['m1'], params['v1'], params['b1'])
    s2, t2 = fold(params['g2'], params['be2'], params['m2'], params['v2'], params['b2'])

    def pack_conv(w, scale, cin, cin_p):      # w: (C_out, cin, K) -> (K, cin_p, C_out_p)
        wt = jnp.transpose(w, (2, 1, 0)) * scale[None, None, :]               # BN scale folded
        wt = jnp.pad(wt, ((0, 0), (0, cin_p - cin), (0, C_out_p - C_out)))
        return wt.astype(compute_dtype)

    w1p = pack_conv(params['w1'], s1, C_in, C_in_p)
    w2p = pack_conv(params['w2'], s2, C_out, C_out_p)
    wresp = jnp.pad(jnp.transpose(params['wres'], (1, 0)),
                    ((0, C_in_p - C_in), (0, C_out_p - C_out))).astype(compute_dtype)

    kernel = functools.partial(conv1dblock_kernel, L=L, TL=TL, K=K, P=P)

    out = pl.pallas_call(
        kernel,
        out_shape=jax.ShapeDtypeStruct((B, Lp, C_out_p), out_dtype),
        grid_spec=pltpu.PrefetchScalarGridSpec(
            num_scalar_prefetch=0,
            grid=(B, NT),
            in_specs=[
                # x_pad is passed three times (same HBM buffer): main TL-row block plus 16-row
                # left/right halo slabs -- the overlapping window lives only in the index maps.
                pl.BlockSpec((None, TL, C_in_p), lambda b, t: (b, t, 0)),
                pl.BlockSpec((None, HR, C_in_p),
                             lambda b, t: (b, jnp.maximum(t * nb - 1, 0), 0)),  # left halo
                pl.BlockSpec((None, HR, C_in_p), lambda b, t: (b, (t + 1) * nb, 0)),  # right halo
                pl.BlockSpec((K, C_in_p, C_out_p), lambda b, t: (0, 0, 0)),     # w1 (scale folded)
                pl.BlockSpec((1, C_out_p), lambda b, t: (0, 0)),                # bn1 shift (+b1)
                pl.BlockSpec((K, C_out_p, C_out_p), lambda b, t: (0, 0, 0)),    # w2 (scale folded)
                pl.BlockSpec((1, C_out_p), lambda b, t: (0, 0)),                # bn2 shift (+b2)
                pl.BlockSpec((C_in_p, C_out_p), lambda b, t: (0, 0)),           # wres
            ],
            out_specs=pl.BlockSpec((None, TL, C_out_p), lambda b, t: (b, t, 0)),
        ),
        compiler_params=pltpu.CompilerParams(
            dimension_semantics=("parallel", "parallel"),   # independent tiles -> megacore / v7x
            vmem_limit_bytes=48 * 1024 * 1024,              # > v5e 16 MiB default, < v7x 64 MiB phys
        ),
    )(x_pad, x_pad, x_pad, w1p, t1, w2p, t2, wresp)

    out = out[:, :L, :C_out]
    if return_channels_last:
        return out                                          # (B, L, C_out): chain blocks lane-dense
    return jnp.transpose(out, (0, 2, 1))                    # module layout (B, C_out, L)


def ref_forward(x_ncl, params, *, kersize=3, stride=1, padding=1, eps=1e-5):
    dn = ('NCH', 'OIH', 'NCH')

    def bn(y, g, be, m, v):
        return (g[None, :, None] * (y - m[None, :, None]) /
                jnp.sqrt(v[None, :, None] + eps) + be[None, :, None])

    res = jnp.einsum('bcl,oc->bol', x_ncl, params['wres'])
    y = lax.conv_general_dilated(x_ncl, params['w1'], (stride,), [(padding, padding)],
                                 dimension_numbers=dn) + params['b1'][None, :, None]
    y = jnp.maximum(bn(y, params['g1'], params['be1'], params['m1'], params['v1']), 0.0)
    y = lax.conv_general_dilated(y, params['w2'], (stride,), [(padding, padding)],
                                 dimension_numbers=dn) + params['b2'][None, :, None]
    y = jnp.maximum(bn(y, params['g2'], params['be2'], params['m2'], params['v2']), 0.0)
    return y + res


if __name__ == "__main__":
    B, C_in, C_out, K = 2, 4, 8, 3

    key = jax.random.PRNGKey(0)
    ks = jax.random.split(key, 16)
    params = {
        'w1':   jax.random.normal(ks[0], (C_out, C_in, K), jnp.float32) * 0.2,
        'b1':   jax.random.normal(ks[1], (C_out,), jnp.float32) * 0.1,
        'w2':   jax.random.normal(ks[2], (C_out, C_out, K), jnp.float32) * 0.2,
        'b2':   jax.random.normal(ks[3], (C_out,), jnp.float32) * 0.1,
        'wres': jax.random.normal(ks[4], (C_out, C_in), jnp.float32) * 0.3,
        'g1':   1.0 + 0.1 * jax.random.normal(ks[5], (C_out,), jnp.float32),
        'be1':  0.1 * jax.random.normal(ks[6], (C_out,), jnp.float32),
        'm1':   0.1 * jax.random.normal(ks[7], (C_out,), jnp.float32),
        'v1':   jax.random.uniform(ks[8], (C_out,), jnp.float32, 0.5, 1.5),
        'g2':   1.0 + 0.1 * jax.random.normal(ks[9], (C_out,), jnp.float32),
        'be2':  0.1 * jax.random.normal(ks[10], (C_out,), jnp.float32),
        'm2':   0.1 * jax.random.normal(ks[11], (C_out,), jnp.float32),
        'v2':   jax.random.uniform(ks[12], (C_out,), jnp.float32, 0.5, 1.5),
    }

    # (L, tile_l): single-tile case, and a multi-tile case (NT=3, ragged tail) exercising the
    # halo-slab stitching, the t==0 zeroed halo, and the out-of-range h masking.
    for L, tile_l in [(16, 1024), (40, 16)]:
        x = jax.random.normal(jax.random.fold_in(ks[13], L), (B, C_in, L), jnp.float32)
        expected = ref_forward(x, params, kersize=K, stride=1, padding=(K - 1) // 2)

        # f32 compute path: validates the kernel math (tiling, halos, folding) tightly.
        out_f32 = conv1dblock_forward(x, params, kersize=K, stride=1, padding=(K - 1) // 2,
                                      tile_l=tile_l, compute_dtype=jnp.float32)
        out_f32 = jax.block_until_ready(out_f32)
        assert out_f32.shape == (B, C_out, L)
        err = jnp.max(jnp.abs(out_f32 - expected))
        assert jnp.allclose(out_f32, expected, atol=2e-4, rtol=2e-4), \
            f"f32 L={L} max abs err = {err}"

        # bf16-MXU path (default): f32 accumulation, looser tolerance for bf16 inputs.
        out_bf16 = conv1dblock_forward(x, params, kersize=K, stride=1, padding=(K - 1) // 2,
                                       tile_l=tile_l, compute_dtype=jnp.bfloat16)
        out_bf16 = jax.block_until_ready(out_bf16)
        assert out_bf16.shape == (B, C_out, L)
        err = jnp.max(jnp.abs(out_bf16 - expected))
        assert jnp.allclose(out_bf16, expected, atol=1.5e-1, rtol=1.5e-1), \
            f"bf16 L={L} max abs err = {err}"

    print("KERNEL_OK")
</pallas_src>

<mosaic_0001>
module attributes {stable_mosaic.version = 11 : i64} {
  func.func @conv1dblock_kernel(%arg0: i32, %arg1: i32, %arg2: memref<1x16x128xf32, #tpu.memory_space<vmem>>, %arg3: memref<1x16x128xf32, #tpu.memory_space<vmem>>, %arg4: memref<1x16x128xf32, #tpu.memory_space<vmem>>, %arg5: memref<3x128x128xf32, #tpu.memory_space<vmem>>, %arg6: memref<1x128xf32, #tpu.memory_space<vmem>>, %arg7: memref<3x128x128xf32, #tpu.memory_space<vmem>>, %arg8: memref<1x128xf32, #tpu.memory_space<vmem>>, %arg9: memref<128x128xf32, #tpu.memory_space<vmem>>, %arg10: memref<1x16x128xf32, #tpu.memory_space<vmem>>) attributes {dimension_semantics = [#tpu.dimension_semantics<parallel>, #tpu.dimension_semantics<parallel>], iteration_bounds = array<i64: 2, 1>, scalar_prefetch = 0 : i64, scratch_operands = 0 : i64, tpu.core_type = #tpu.core_type<tc>, window_params = [{transform_indices = @transform_0, window_bounds = array<i64: 1, 16, 128>}, {transform_indices = @transform_1, window_bounds = array<i64: 1, 16, 128>}, {transform_indices = @transform_2, window_bounds = array<i64: 1, 16, 128>}, {pipeline_mode = #tpu.pipeline_mode<synchronous>, transform_indices = @transform_3, window_bounds = array<i64: 3, 128, 128>}, {pipeline_mode = #tpu.pipeline_mode<synchronous>, transform_indices = @transform_4, window_bounds = array<i64: 1, 128>}, {pipeline_mode = #tpu.pipeline_mode<synchronous>, transform_indices = @transform_5, window_bounds = array<i64: 3, 128, 128>}, {pipeline_mode = #tpu.pipeline_mode<synchronous>, transform_indices = @transform_6, window_bounds = array<i64: 1, 128>}, {pipeline_mode = #tpu.pipeline_mode<synchronous>, transform_indices = @transform_7, window_bounds = array<i64: 128, 128>}, {transform_indices = @transform_8, window_bounds = array<i64: 1, 16, 128>}]} {
    %c0 = arith.constant 0 : index
    %c0_0 = arith.constant 0 : index
    %c0_1 = arith.constant 0 : index
    %0 = vector.load %arg2[%c0, %c0_0, %c0_1] : memref<1x16x128xf32, #tpu.memory_space<vmem>>, vector<1x16x128xf32>
    %1 = vector.shape_cast %0 : vector<1x16x128xf32> to vector<16x128xf32>
    %c0_2 = arith.constant 0 : index
    %c0_3 = arith.constant 0 : index
    %c0_4 = arith.constant 0 : index
    %2 = vector.load %arg3[%c0_2, %c0_3, %c0_4] : memref<1x16x128xf32, #tpu.memory_space<vmem>>, vector<1x16x128xf32>
    %3 = vector.shape_cast %2 : vector<1x16x128xf32> to vector<16x128xf32>
    %c0_i32 = arith.constant 0 : i32
    %4 = arith.cmpi sgt, %arg1, %c0_i32 : i32
    %cst = arith.constant 0.000000e+00 : f32
    %5 = vector.broadcast %cst : f32 to vector<16x128xf32>
    %6 = arith.select %4, %3, %5 : vector<16x128xf32>
    %c0_5 = arith.constant 0 : index
    %c0_6 = arith.constant 0 : index
    %c0_7 = arith.constant 0 : index
    %7 = vector.load %arg4[%c0_5, %c0_6, %c0_7] : memref<1x16x128xf32, #tpu.memory_space<vmem>>, vector<1x16x128xf32>
    %8 = vector.shape_cast %7 : vector<1x16x128xf32> to vector<16x128xf32>
    %9 = tpu.concatenate %6, %1, %8 in 0 : vector<16x128xf32>, vector<16x128xf32>, vector<16x128xf32> -> vector<48x128xf32>
    %10 = vector.extract_strided_slice %9 {offsets = [14, 0], sizes = [18, 128], strides = [1, 1]} : vector<48x128xf32> to vector<18x128xf32>
    %c0_8 = arith.constant 0 : index
    %c0_9 = arith.constant 0 : index
    %c0_10 = arith.constant 0 : index
    %11 = vector.load %arg5[%c0_8, %c0_9, %c0_10] : memref<3x128x128xf32, #tpu.memory_space<vmem>>, vector<1x128x128xf32>
    %12 = vector.shape_cast %11 : vector<1x128x128xf32> to vector<128x128xf32>
    %cst_11 = arith.constant dense<0.000000e+00> : vector<18x128xf32>
    %13 = tpu.matmul %10, %12, %cst_11 {dimension_numbers = #tpu.dot_dimension_numbers<[1], [0], [0], [1], [0, 0, 1, 1], [], []>} : vector<18x128xf32>, vector<128x128xf32>, vector<18x128xf32> -> vector<18x128xf32>
    %14 = vector.extract_strided_slice %9 {offsets = [15, 0], sizes = [18, 128], strides = [1, 1]} : vector<48x128xf32> to vector<18x128xf32>
    %c1 = arith.constant 1 : index
    %c0_12 = arith.constant 0 : index
    %c0_13 = arith.constant 0 : index
    %15 = vector.load %arg5[%c1, %c0_12, %c0_13] : memref<3x128x128xf32, #tpu.memory_space<vmem>>, vector<1x128x128xf32>
    %16 = vector.shape_cast %15 : vector<1x128x128xf32> to vector<128x128xf32>
    %cst_14 = arith.constant dense<0.000000e+00> : vector<18x128xf32>
    %17 = tpu.matmul %14, %16, %cst_14 {dimension_numbers = #tpu.dot_dimension_numbers<[1], [0], [0], [1], [0, 0, 1, 1], [], []>} : vector<18x128xf32>, vector<128x128xf32>, vector<18x128xf32> -> vector<18x128xf32>
    %18 = arith.addf %13, %17 : vector<18x128xf32>
    %19 = vector.extract_strided_slice %9 {offsets = [16, 0], sizes = [18, 128], strides = [1, 1]} : vector<48x128xf32> to vector<18x128xf32>
    %c2 = arith.constant 2 : index
    %c0_15 = arith.constant 0 : index
    %c0_16 = arith.constant 0 : index
    %20 = vector.load %arg5[%c2, %c0_15, %c0_16] : memref<3x128x128xf32, #tpu.memory_space<vmem>>, vector<1x128x128xf32>
    %21 = vector.shape_cast %20 : vector<1x128x128xf32> to vector<128x128xf32>
    %cst_17 = arith.constant dense<0.000000e+00> : vector<18x128xf32>
    %22 = tpu.matmul %19, %21, %cst_17 {dimension_numbers = #tpu.dot_dimension_numbers<[1], [0], [0], [1], [0, 0, 1, 1], [], []>} : vector<18x128xf32>, vector<128x128xf32>, vector<18x128xf32> -> vector<18x128xf32>
    %23 = arith.addf %18, %22 : vector<18x128xf32>
    %c0_18 = arith.constant 0 : index
    %c0_19 = arith.constant 0 : index
    %24 = vector.load %arg6[%c0_18, %c0_19] : memref<1x128xf32, #tpu.memory_space<vmem>>, vector<1x128xf32>
    %25 = vector.broadcast %24 : vector<1x128xf32> to vector<18x128xf32>
    %26 = arith.addf %23, %25 : vector<18x128xf32>
    %cst_20 = arith.constant 0.000000e+00 : f32
    %27 = vector.broadcast %cst_20 : f32 to vector<18x128xf32>
    %28 = arith.maximumf %26, %27 : vector<18x128xf32>
    %c16_i32 = arith.constant 16 : i32
    %29 = arith.muli %arg1, %c16_i32 : i32
    %c1_i32 = arith.constant 1 : i32
    %30 = arith.subi %29, %c1_i32 : i32
    %31 = tpu.iota {dimensions = array<i32: 0>} : vector<18x1xi32>
    %32 = vector.broadcast %30 : i32 to vector<18x1xi32>
    %33 = arith.addi %32, %31 : vector<18x1xi32>
    %c0_i32_21 = arith.constant 0 : i32
    %34 = vector.broadcast %c0_i32_21 : i32 to vector<18x1xi32>
    %35 = arith.cmpi sge, %33, %34 : vector<18x1xi32>
    %c16_i32_22 = arith.constant 16 : i32
    %36 = vector.broadcast %c16_i32_22 : i32 to vector<18x1xi32>
    %37 = arith.cmpi slt, %33, %36 : vector<18x1xi32>
    %38 = arith.andi %35, %37 : vector<18x1xi1>
    %cst_23 = arith.constant 0.000000e+00 : f32
    %39 = vector.shape_cast %38 : vector<18x1xi1> to vector<18x1xi1>
    %40 = vector.broadcast %39 : vector<18x1xi1> to vector<18x128xi1>
    %41 = vector.broadcast %cst_23 : f32 to vector<18x128xf32>
    %42 = arith.select %40, %28, %41 : vector<18x128xi1>, vector<18x128xf32>
    %43 = vector.extract_strided_slice %42 {offsets = [0, 0], sizes = [16, 128], strides = [1, 1]} : vector<18x128xf32> to vector<16x128xf32>
    %c0_24 = arith.constant 0 : index
    %c0_25 = arith.constant 0 : index
    %c0_26 = arith.constant 0 : index
    %44 = vector.load %arg7[%c0_24, %c0_25, %c0_26] : memref<3x128x128xf32, #tpu.memory_space<vmem>>, vector<1x128x128xf32>
    %45 = vector.shape_cast %44 : vector<1x128x128xf32> to vector<128x128xf32>
    %cst_27 = arith.constant dense<0.000000e+00> : vector<16x128xf32>
    %46 = tpu.matmul %43, %45, %cst_27 {dimension_numbers = #tpu.dot_dimension_numbers<[1], [0], [0], [1], [0, 0, 1, 1], [], []>} : vector<16x128xf32>, vector<128x128xf32>, vector<16x128xf32> -> vector<16x128xf32>
    %47 = vector.extract_strided_slice %42 {offsets = [1, 0], sizes = [16, 128], strides = [1, 1]} : vector<18x128xf32> to vector<16x128xf32>
    %c1_28 = arith.constant 1 : index
    %c0_29 = arith.constant 0 : index
    %c0_30 = arith.constant 0 : index
    %48 = vector.load %arg7[%c1_28, %c0_29, %c0_30] : memref<3x128x128xf32, #tpu.memory_space<vmem>>, vector<1x128x128xf32>
    %49 = vector.shape_cast %48 : vector<1x128x128xf32> to vector<128x128xf32>
    %cst_31 = arith.constant dense<0.000000e+00> : vector<16x128xf32>
    %50 = tpu.matmul %47, %49, %cst_31 {dimension_numbers = #tpu.dot_dimension_numbers<[1], [0], [0], [1], [0, 0, 1, 1], [], []>} : vector<16x128xf32>, vector<128x128xf32>, vector<16x128xf32> -> vector<16x128xf32>
    %51 = arith.addf %46, %50 : vector<16x128xf32>
    %52 = vector.extract_strided_slice %42 {offsets = [2, 0], sizes = [16, 128], strides = [1, 1]} : vector<18x128xf32> to vector<16x128xf32>
    %c2_32 = arith.constant 2 : index
    %c0_33 = arith.constant 0 : index
    %c0_34 = arith.constant 0 : index
    %53 = vector.load %arg7[%c2_32, %c0_33, %c0_34] : memref<3x128x128xf32, #tpu.memory_space<vmem>>, vector<1x128x128xf32>
    %54 = vector.shape_cast %53 : vector<1x128x128xf32> to vector<128x128xf32>
    %cst_35 = arith.constant dense<0.000000e+00> : vector<16x128xf32>
    %55 = tpu.matmul %52, %54, %cst_35 {dimension_numbers = #tpu.dot_dimension_numbers<[1], [0], [0], [1], [0, 0, 1, 1], [], []>} : vector<16x128xf32>, vector<128x128xf32>, vector<16x128xf32> -> vector<16x128xf32>
    %56 = arith.addf %51, %55 : vector<16x128xf32>
    %c0_36 = arith.constant 0 : index
    %c0_37 = arith.constant 0 : index
    %57 = vector.load %arg8[%c0_36, %c0_37] : memref<1x128xf32, #tpu.memory_space<vmem>>, vector<1x128xf32>
    %58 = vector.broadcast %57 : vector<1x128xf32> to vector<16x128xf32>
    %59 = arith.addf %56, %58 : vector<16x128xf32>
    %cst_38 = arith.constant 0.000000e+00 : f32
    %60 = vector.broadcast %cst_38 : f32 to vector<16x128xf32>
    %61 = arith.maximumf %59, %60 : vector<16x128xf32>
    %c0_39 = arith.constant 0 : index
    %c0_40 = arith.constant 0 : index
    %62 = vector.load %arg9[%c0_39, %c0_40] : memref<128x128xf32, #tpu.memory_space<vmem>>, vector<128x128xf32>
    %cst_41 = arith.constant dense<0.000000e+00> : vector<16x128xf32>
    %63 = tpu.matmul %1, %62, %cst_41 {dimension_numbers = #tpu.dot_dimension_numbers<[1], [0], [0], [1], [0, 0, 1, 1], [], []>} : vector<16x128xf32>, vector<128x128xf32>, vector<16x128xf32> -> vector<16x128xf32>
    %64 = arith.addf %61, %63 : vector<16x128xf32>
    %c0_42 = arith.constant 0 : index
    %c0_43 = arith.constant 0 : index
    %c0_44 = arith.constant 0 : index
    %65 = vector.load %arg10[%c0_42, %c0_43, %c0_44] : memref<1x16x128xf32, #tpu.memory_space<vmem>>, vector<1x16x128xf32>
    %66 = vector.shape_cast %65 : vector<1x16x128xf32> to vector<16x128xf32>
    %67 = vector.shape_cast %64 : vector<16x128xf32> to vector<1x16x128xf32>
    tpu.vector_store %arg10[%c0_42, %c0_43, %c0_44], %67 {strides = array<i32>} : memref<1x16x128xf32, #tpu.memory_space<vmem>>, vector<1x16x128xf32>,
    return
  }
  func.func @transform_0(%arg0: i32, %arg1: i32) -> (i32, i32, i32) {
    %c0_i32 = arith.constant 0 : i32
    %c0_i32_0 = arith.constant 0 : i32
    return %arg0, %arg1, %c0_i32 : i32, i32, i32
  }
  func.func @transform_1(%arg0: i32, %arg1: i32) -> (i32, i32, i32) {
    %c1_i32 = arith.constant 1 : i32
    %0 = arith.muli %arg1, %c1_i32 : i32
    %c1_i32_0 = arith.constant 1 : i32
    %1 = arith.subi %0, %c1_i32_0 : i32
    %c0_i32 = arith.constant 0 : i32
    %2 = arith.maxsi %1, %c0_i32 : i32
    %c0_i32_1 = arith.constant 0 : i32
    %c0_i32_2 = arith.constant 0 : i32
    return %arg0, %2, %c0_i32_1 : i32, i32, i32
  }
  func.func @transform_2(%arg0: i32, %arg1: i32) -> (i32, i32, i32) {
    %c1_i32 = arith.constant 1 : i32
    %0 = arith.addi %arg1, %c1_i32 : i32
    %c1_i32_0 = arith.constant 1 : i32
    %1 = arith.muli %0, %c1_i32_0 : i32
    %c0_i32 = arith.constant 0 : i32
    %c0_i32_1 = arith.constant 0 : i32
    return %arg0, %1, %c0_i32 : i32, i32, i32
  }
  func.func @transform_3(%arg0: i32, %arg1: i32) -> (i32, i32, i32) {
    %c0_i32 = arith.constant 0 : i32
    %c0_i32_0 = arith.constant 0 : i32
    %c0_i32_1 = arith.constant 0 : i32
    %c0_i32_2 = arith.constant 0 : i32
    return %c0_i32, %c0_i32_0, %c0_i32_1 : i32, i32, i32
  }
  func.func @transform_4(%arg0: i32, %arg1: i32) -> (i32, i32) {
    %c0_i32 = arith.constant 0 : i32
    %c0_i32_0 = arith.constant 0 : i32
    %c0_i32_1 = arith.constant 0 : i32
    return %c0_i32, %c0_i32_0 : i32, i32
  }
  func.func @transform_5(%arg0: i32, %arg1: i32) -> (i32, i32, i32) {
    %c0_i32 = arith.constant 0 : i32
    %c0_i32_0 = arith.constant 0 : i32
    %c0_i32_1 = arith.constant 0 : i32
    %c0_i32_2 = arith.constant 0 : i32
    return %c0_i32, %c0_i32_0, %c0_i32_1 : i32, i32, i32
  }
  func.func @transform_6(%arg0: i32, %arg1: i32) -> (i32, i32) {
    %c0_i32 = arith.constant 0 : i32
    %c0_i32_0 = arith.constant 0 : i32
    %c0_i32_1 = arith.constant 0 : i32
    return %c0_i32, %c0_i32_0 : i32, i32
  }
  func.func @transform_7(%arg0: i32, %arg1: i32) -> (i32, i32) {
    %c0_i32 = arith.constant 0 : i32
    %c0_i32_0 = arith.constant 0 : i32
    %c0_i32_1 = arith.constant 0 : i32
    return %c0_i32, %c0_i32_0 : i32, i32
  }
  func.func @transform_8(%arg0: i32, %arg1: i32) -> (i32, i32, i32) {
    %c0_i32 = arith.constant 0 : i32
    %c0_i32_0 = arith.constant 0 : i32
    return %arg0, %arg1, %c0_i32 : i32, i32, i32
  }
}

</mosaic_0001>

<llo_original>
// kernel: tpu_custom_call.1
$region0: #{tpu_custom_call.1}
  #allocation0 [shape = 'u32[]', space=smem, size = 0x4, offset = 0x4, fixed_abs, tag = 'smem constant byte address 0x4 - core index']
  #allocation1 [shape = 'u32[144,128]{1,0:T(1,128)}', space=vmem, size = 0x12000, scoped, tag = 'internal scratch']
  %s0 = inlined_call_operand.hbm [shape: f32[2,32,128], index: 0, kind: input, shape index: {}]
  %s1 = inlined_call_operand.hbm [shape: f32[2,32,128], index: 1, kind: input, shape index: {}]
  %s2 = inlined_call_operand.hbm [shape: f32[2,32,128], index: 2, kind: input, shape index: {}]
  %s3 = inlined_call_operand.hbm [shape: f32[3,128,128], index: 3, kind: input, shape index: {}]
  %s4 = inlined_call_operand.vmem [shape: f32[1,128], index: 4, kind: input, shape index: {}]
  %s5 = inlined_call_operand.hbm [shape: f32[3,128,128], index: 5, kind: input, shape index: {}]
  %s6 = inlined_call_operand.vmem [shape: f32[1,128], index: 6, kind: input, shape index: {}]
  %s7 = inlined_call_operand.hbm [shape: f32[128,128], index: 7, kind: input, shape index: {}]
  %s8 = inlined_call_operand.hbm [shape: f32[2,16,128], index: 8, kind: output, shape index: {}]
  %s9 = sld [smem:[#allocation0]]
  $region89: #{tpu_custom_call.1} parent=0
    _
  %s11 = ssub.s32 1, %s9
  %s12 = scalar_select 0, %s11, %s9
  $region1: #{tpu_custom_call.1} parent=0
    #allocation2 [shape = 'u8[16384]{0}', space=vmem, size = 0x4000, scoped, tag = 'input window, operand 0']
    #allocation3 [shape = 's32[2]{0}', space=sflag, size = 0x8, scoped, tag = 'scoped memory for tpu_custom_call.1']
    #allocation4 [shape = 's32[2]{0}', space=sflag, size = 0x8, scoped, tag = 'scoped memory for tpu_custom_call.1']
    #allocation5 [shape = 'u8[16384]{0}', space=vmem, size = 0x4000, scoped, tag = 'input window, operand 1']
    #allocation6 [shape = 's32[2]{0}', space=sflag, size = 0x8, scoped, tag = 'scoped memory for tpu_custom_call.1']
    #allocation7 [shape = 'u8[16384]{0}', space=vmem, size = 0x4000, scoped, tag = 'input window, operand 2']
    #allocation8 [shape = 'u8[196608]{0}', space=vmem, size = 0x30000, scoped, tag = 'input window, operand 3, single buffered']
    #allocation9 [shape = 's32[1]{0}', space=sflag, size = 0x4, scoped, tag = 'scoped memory for tpu_custom_call.1']
    #allocation10 [shape = 'u8[196608]{0}', space=vmem, size = 0x30000, scoped, tag = 'input window, operand 5, single buffered']
    #allocation11 [shape = 'u8[65536]{0}', space=vmem, size = 0x10000, scoped, tag = 'input window, operand 7, single buffered']
    #allocation12 [shape = 's32[1]{0}', space=sflag, size = 0x4, scoped, tag = 'scoped memory for tpu_custom_call.1']
    #allocation13 [shape = 'u8[16384]{0}', space=vmem, size = 0x4000, scoped, tag = 'output window, operand 0']
    %13 = vsyncpa [#allocation3], 0
    %s14 = scalar_lea.sflag [#allocation3], 1
    %15 = vsyncpa %s14, 0
    %16 = vsyncpa [#allocation6], 0
    %s17 = scalar_lea.sflag [#allocation6], 1
    %18 = vsyncpa %s17, 0
    %19 = vsyncpa [#allocation9], 0
    %20 = vsyncpa [#allocation12], 0
    %21 = vsyncpa [#allocation4], 0
    %s22 = scalar_lea.sflag [#allocation4], 1
    %23 = vsyncpa %s22, 0
    loop: start=0, step=1, limit=4
    $region2: #{tpu_custom_call.1} parent=1 // loop_pre_header
      _
    $region3: #{tpu_custom_call.1} parent=1 // loop_header
      %s25 = sphi 0, %s29
      %p26 = scmp.ge.s32.totalorder %s25, 4
      %s32 = sphi 0, %s44
      %s33 = sphi 0, %s40
      %s34 = sphi 0, %s32
      %s35 = sphi 0, %s33
      %s36 = sphi 0, %s34
      %s37 = sphi 0, %s35
      %s49 = sphi 0, %s51
      %s52 = sphi 0, %s49
      %s53 = sphi 0, %s52
      %s69 = sphi 0, %s53
      %s83 = sphi 0, %s85
      %s86 = sphi 0, %s83
      %s87 = sphi 0, %s86
      %s103 = sphi 0, %s87
      %s113 = sphi 0, %s115
      %s116 = sphi 0, %s113
      %s117 = sphi 0, %s116
      %s133 = sphi 0, %s117
      %s137 = sphi 0, %s137
      %s139 = sphi 0, %s137
      %s140 = sphi 0, %s139
      %s154 = sphi 0, %s140
      %s158 = sphi 0, %s158
      %s160 = sphi 0, %s158
      %s161 = sphi 0, %s160
      %s175 = sphi 0, %s161
      %s179 = sphi 0, %s179
      %s181 = sphi 0, %s179
      %s182 = sphi 0, %s181
      %s196 = sphi 0, %s182
      %s200 = sphi 0, %s200
      %s202 = sphi 0, %s200
      %s203 = sphi 0, %s202
      %s217 = sphi 0, %s203
      %s221 = sphi 0, %s221
      %s223 = sphi 0, %s221
      %s224 = sphi 0, %s223
      %s238 = sphi 0, %s224
      %s246 = sphi 0, %s248
      %s249 = sphi 0, %s246
      %s250 = sphi 0, %s249
      %s266 = sphi 0, %s250
    $region4: #{tpu_custom_call.1} parent=1 // loop_header_branch
      %28 = sbr.rel (%p26) target = $region8
    $region5: #{tpu_custom_call.1} parent=1 // loop_body
      %s30 = ssub.s32 %s25, 1
      %s31 = ssub.s32 %s25, 2
      %s38 = sadd.s32 1, %s33
      %p39 = scmp.ge.s32.totalorder %s38, 1
      %s40 = scalar_select %p39, 0, %s38
      %s41 = sadd.s32 1, %s32
      %s42 = scalar_select %p39, %s41, %s32
      %p43 = scmp.ge.s32.totalorder %s42, 2
      %s44 = scalar_select %p43, 0, %s42
      %s45 = ssub.s32 %s32, %s44
      %s46 = ssub.s32 %s33, %s40
      %s47 = sor.u32 %s45, %s46
      %p48 = scmp.eq.s32.totalorder %s47, 0
      %s50 = sadd.s32 %s49, 1
      %s51 = scalar_select %p48, %s49, %s50
      %p54 = pneg %p48
      %p55 = scmp.eq.s32.totalorder %s25, 1
      %p56 = por %p54, %p55
      %p57 = scmp.ne.s32.totalorder %s49, %s52
      %p58 = scmp.eq.s32.totalorder %s25, 0
      %p59 = por %p57, %p58
      %p60 = scmp.ne.s32.totalorder %s49, %s52
      %p61 = scmp.eq.s32.totalorder %s30, 1
      %p62 = por %p60, %p61
      %p63 = scmp.ne.s32.totalorder %s52, %s53
      %p64 = scmp.eq.s32.totalorder %s30, 0
      %p65 = por %p63, %p64
      %p66 = scmp.ne.s32.totalorder %s52, %s53
      %p67 = scmp.eq.s32.totalorder %s31, 1
      %p68 = por %p66, %p67
      %p70 = scmp.ne.s32.totalorder %s53, %s69
      %p71 = scmp.eq.s32.totalorder %s31, 0
      %p72 = por %p70, %p71
      %s73 = ssub.s32 %s33, 1
      %p74 = scmp.gt.s32.totalorder %s73, 0
      %s75 = scalar_select %p74, %s73, 0
      %s76 = ssub.s32 %s40, 1
      %p77 = scmp.gt.s32.totalorder %s76, 0
      %s78 = scalar_select %p77, %s76, 0
      %s79 = ssub.s32 %s32, %s44
      %s80 = ssub.s32 %s75, %s78
      %s81 = sor.u32 %s79, %s80
      %p82 = scmp.eq.s32.totalorder %s81, 0
      %s84 = sadd.s32 %s83, 1
      %s85 = scalar_select %p82, %s83, %s84
      %p88 = pneg %p82
      %p89 = scmp.eq.s32.totalorder %s25, 1
      %p90 = por %p88, %p89
      %p91 = scmp.ne.s32.totalorder %s83, %s86
      %p92 = scmp.eq.s32.totalorder %s25, 0
      %p93 = por %p91, %p92
      %p94 = scmp.ne.s32.totalorder %s83, %s86
      %p95 = scmp.eq.s32.totalorder %s30, 1
      %p96 = por %p94, %p95
      %p97 = scmp.ne.s32.totalorder %s86, %s87
      %p98 = scmp.eq.s32.totalorder %s30, 0
      %p99 = por %p97, %p98
      %p100 = scmp.ne.s32.totalorder %s86, %s87
      %p101 = scmp.eq.s32.totalorder %s31, 1
      %p102 = por %p100, %p101
      %p104 = scmp.ne.s32.totalorder %s87, %s103
      %p105 = scmp.eq.s32.totalorder %s31, 0
      %p106 = por %p104, %p105
      %s107 = sadd.s32 %s33, 1
      %s108 = sadd.s32 %s40, 1
      %s109 = ssub.s32 %s32, %s44
      %s110 = ssub.s32 %s107, %s108
      %s111 = sor.u32 %s109, %s110
      %p112 = scmp.eq.s32.totalorder %s111, 0
      %s114 = sadd.s32 %s113, 1
      %s115 = scalar_select %p112, %s113, %s114
      %p118 = pneg %p112
      %p119 = scmp.eq.s32.totalorder %s25, 1
      %p120 = por %p118, %p119
      %p121 = scmp.ne.s32.totalorder %s113, %s116
      %p122 = scmp.eq.s32.totalorder %s25, 0
      %p123 = por %p121, %p122
      %p124 = scmp.ne.s32.totalorder %s113, %s116
      %p125 = scmp.eq.s32.totalorder %s30, 1
      %p126 = por %p124, %p125
      %p127 = scmp.ne.s32.totalorder %s116, %s117
      %p128 = scmp.eq.s32.totalorder %s30, 0
      %p129 = por %p127, %p128
      %p130 = scmp.ne.s32.totalorder %s116, %s117
      %p131 = scmp.eq.s32.totalorder %s31, 1
      %p132 = por %p130, %p131
      %p134 = scmp.ne.s32.totalorder %s117, %s133
      %p135 = scmp.eq.s32.totalorder %s31, 0
      %p136 = por %p134, %p135
      %s138 = sadd.s32 %s137, 1
      %p141 = scmp.eq.s32.totalorder %s25, 1
      %p142 = scmp.ne.s32.totalorder %s137, %s139
      %p143 = scmp.eq.s32.totalorder %s25, 0
      %p144 = por %p142, %p143
      %p145 = scmp.ne.s32.totalorder %s137, %s139
      %p146 = scmp.eq.s32.totalorder %s30, 1
      %p147 = por %p145, %p146
      %p148 = scmp.ne.s32.totalorder %s139, %s140
      %p149 = scmp.eq.s32.totalorder %s30, 0
      %p150 = por %p148, %p149
      %p151 = scmp.ne.s32.totalorder %s139, %s140
      %p152 = scmp.eq.s32.totalorder %s31, 1
      %p153 = por %p151, %p152
      %p155 = scmp.ne.s32.totalorder %s140, %s154
      %p156 = scmp.eq.s32.totalorder %s31, 0
      %p157 = por %p155, %p156
      %s159 = sadd.s32 %s158, 1
      %p162 = scmp.eq.s32.totalorder %s25, 1
      %p163 = scmp.ne.s32.totalorder %s158, %s160
      %p164 = scmp.eq.s32.totalorder %s25, 0
      %p165 = por %p163, %p164
      %p166 = scmp.ne.s32.totalorder %s158, %s160
      %p167 = scmp.eq.s32.totalorder %s30, 1
      %p168 = por %p166, %p167
      %p169 = scmp.ne.s32.totalorder %s160, %s161
      %p170 = scmp.eq.s32.totalorder %s30, 0
      %p171 = por %p169, %p170
      %p172 = scmp.ne.s32.totalorder %s160, %s161
      %p173 = scmp.eq.s32.totalorder %s31, 1
      %p174 = por %p172, %p173
      %p176 = scmp.ne.s32.totalorder %s161, %s175
      %p177 = scmp.eq.s32.totalorder %s31, 0
      %p178 = por %p176, %p177
      %s180 = sadd.s32 %s179, 1
      %p183 = scmp.eq.s32.totalorder %s25, 1
      %p184 = scmp.ne.s32.totalorder %s179, %s181
      %p185 = scmp.eq.s32.totalorder %s25, 0
      %p186 = por %p184, %p185
      %p187 = scmp.ne.s32.totalorder %s179, %s181
      %p188 = scmp.eq.s32.totalorder %s30, 1
      %p189 = por %p187, %p188
      %p190 = scmp.ne.s32.totalorder %s181, %s182
      %p191 = scmp.eq.s32.totalorder %s30, 0
      %p192 = por %p190, %p191
      %p193 = scmp.ne.s32.totalorder %s181, %s182
      %p194 = scmp.eq.s32.totalorder %s31, 1
      %p195 = por %p193, %p194
      %p197 = scmp.ne.s32.totalorder %s182, %s196
      %p198 = scmp.eq.s32.totalorder %s31, 0
      %p199 = por %p197, %p198
      %s201 = sadd.s32 %s200, 1
      %p204 = scmp.eq.s32.totalorder %s25, 1
      %p205 = scmp.ne.s32.totalorder %s200, %s202
      %p206 = scmp.eq.s32.totalorder %s25, 0
      %p207 = por %p205, %p206
      %p208 = scmp.ne.s32.totalorder %s200, %s202
      %p209 = scmp.eq.s32.totalorder %s30, 1
      %p210 = por %p208, %p209
      %p211 = scmp.ne.s32.totalorder %s202, %s203
      %p212 = scmp.eq.s32.totalorder %s30, 0
      %p213 = por %p211, %p212
      %p214 = scmp.ne.s32.totalorder %s202, %s203
      %p215 = scmp.eq.s32.totalorder %s31, 1
      %p216 = por %p214, %p215
      %p218 = scmp.ne.s32.totalorder %s203, %s217
      %p219 = scmp.eq.s32.totalorder %s31, 0
      %p220 = por %p218, %p219
      %s222 = sadd.s32 %s221, 1
      %p225 = scmp.eq.s32.totalorder %s25, 1
      %p226 = scmp.ne.s32.totalorder %s221, %s223
      %p227 = scmp.eq.s32.totalorder %s25, 0
      %p228 = por %p226, %p227
      %p229 = scmp.ne.s32.totalorder %s221, %s223
      %p230 = scmp.eq.s32.totalorder %s30, 1
      %p231 = por %p229, %p230
      %p232 = scmp.ne.s32.totalorder %s223, %s224
      %p233 = scmp.eq.s32.totalorder %s30, 0
      %p234 = por %p232, %p233
      %p235 = scmp.ne.s32.totalorder %s223, %s224
      %p236 = scmp.eq.s32.totalorder %s31, 1
      %p237 = por %p235, %p236
      %p239 = scmp.ne.s32.totalorder %s224, %s238
      %p240 = scmp.eq.s32.totalorder %s31, 0
      %p241 = por %p239, %p240
      %s242 = ssub.s32 %s32, %s44
      %s243 = ssub.s32 %s33, %s40
      %s244 = sor.u32 %s242, %s243
      %p245 = scmp.eq.s32.totalorder %s244, 0
      %s247 = sadd.s32 %s246, 1
      %s248 = scalar_select %p245, %s246, %s247
      %p251 = pneg %p245
      %p252 = scmp.eq.s32.totalorder %s25, 1
      %p253 = por %p251, %p252
      %p254 = scmp.ne.s32.totalorder %s246, %s249
      %p255 = scmp.eq.s32.totalorder %s25, 0
      %p256 = por %p254, %p255
      %p257 = scmp.ne.s32.totalorder %s246, %s249
      %p258 = scmp.eq.s32.totalorder %s30, 1
      %p259 = por %p257, %p258
      %p260 = scmp.ne.s32.totalorder %s249, %s250
      %p261 = scmp.eq.s32.totalorder %s30, 0
      %p262 = por %p260, %p261
      %p263 = scmp.ne.s32.totalorder %s249, %s250
      %p264 = scmp.eq.s32.totalorder %s31, 1
      %p265 = por %p263, %p264
      %p267 = scmp.ne.s32.totalorder %s250, %s266
      %p268 = scmp.eq.s32.totalorder %s31, 0
      %p269 = por %p267, %p268
      %p270 = scmp.le.s32.totalorder 1, %s25
      %p271 = scmp.lt.s32.totalorder %s25, 3
      %p272 = pnand %p270, %p271
      %p273 = pneg %p272
      // Predicated region
      $region9: #{tpu_custom_call.1} parent=5 // pred_check
        _
      $region10: #{tpu_custom_call.1} parent=5 // pred_check_branch
        %275 = sbr.rel (%p272) target = $region12
      $region11: #{tpu_custom_call.1} parent=5 // pred_region
        %s276 = ssub.s32 %s25, 1
        // Predicated region
        $region13: #{tpu_custom_call.1} parent=11 // pred_check
          %p277 = pneg %p150
        $region14: #{tpu_custom_call.1} parent=11 // pred_check_branch
          %279 = sbr.rel (%p277) target = $region16
        $region15: #{tpu_custom_call.1} parent=11 // pred_region
          %s281 = ssub.s32 6144, 6144
          %282 = vsyncadd [#allocation9], %s281
          %s283 = sshll.u32 [#allocation8], 4
          %s284 = int_to_ptr.vmem [resolvable:$true] %s283
          %289 = dma.hbm_to_vmem [thread:$0]  %s3, 6144, %s284, [#allocation9], 128, 128, 8
        $region16: #{tpu_custom_call.1} parent=11 // pred_fallthru
          _
        // Predicated region
        $region17: #{tpu_custom_call.1} parent=11 // pred_check
          %p290 = pneg %p171
        $region18: #{tpu_custom_call.1} parent=11 // pred_check_branch
          %292 = sbr.rel (%p290) target = $region20
        $region19: #{tpu_custom_call.1} parent=11 // pred_region
          _
        $region20: #{tpu_custom_call.1} parent=11 // pred_fallthru
          _
        // Predicated region
        $region21: #{tpu_custom_call.1} parent=11 // pred_check
          %p293 = pneg %p192
        $region22: #{tpu_custom_call.1} parent=11 // pred_check_branch
          %295 = sbr.rel (%p293) target = $region24
        $region23: #{tpu_custom_call.1} parent=11 // pred_region
          %s297 = ssub.s32 6144, 6144
          %298 = vsyncadd [#allocation9], %s297
          %s299 = sshll.u32 [#allocation10], 4
          %s300 = int_to_ptr.vmem [resolvable:$true] %s299
          %305 = dma.hbm_to_vmem [thread:$0]  %s5, 6144, %s300, [#allocation9], 128, 128, 8
        $region24: #{tpu_custom_call.1} parent=11 // pred_fallthru
          _
        // Predicated region
        $region25: #{tpu_custom_call.1} parent=11 // pred_check
          %p306 = pneg %p213
        $region26: #{tpu_custom_call.1} parent=11 // pred_check_branch
          %308 = sbr.rel (%p306) target = $region28
        $region27: #{tpu_custom_call.1} parent=11 // pred_region
          _
        $region28: #{tpu_custom_call.1} parent=11 // pred_fallthru
          _
        // Predicated region
        $region29: #{tpu_custom_call.1} parent=11 // pred_check
          %p309 = pneg %p234
        $region30: #{tpu_custom_call.1} parent=11 // pred_check_branch
          %311 = sbr.rel (%p309) target = $region32
        $region31: #{tpu_custom_call.1} parent=11 // pred_region
          %s313 = ssub.s32 2048, 2048
          %314 = vsyncadd [#allocation12], %s313
          %s315 = sshll.u32 [#allocation11], 4
          %s316 = int_to_ptr.vmem [resolvable:$true] %s315
          %321 = dma.hbm_to_vmem [thread:$0]  %s7, 2048, %s316, [#allocation12], 128, 128, 8
        $region32: #{tpu_custom_call.1} parent=11 // pred_fallthru
          _
      $region12: #{tpu_custom_call.1} parent=5 // pred_fallthru
        _
      %p322 = scmp.lt.s32.totalorder %s25, 2
      // Predicated region
      $region33: #{tpu_custom_call.1} parent=5 // pred_check
        %p323 = pneg %p322
      $region34: #{tpu_custom_call.1} parent=5 // pred_check_branch
        %325 = sbr.rel (%p323) target = $region36
      $region35: #{tpu_custom_call.1} parent=5 // pred_region
        // Predicated region
        $region37: #{tpu_custom_call.1} parent=35 // pred_check
          %p326 = pneg %p59
        $region38: #{tpu_custom_call.1} parent=35 // pred_check_branch
          %328 = sbr.rel (%p326) target = $region40
        $region39: #{tpu_custom_call.1} parent=35 // pred_region
          %s329 = sand.u32 %s49, 1
          %s330 = scalar_lea.sflag [#allocation3], %s329
          %s331 = sand.u32 %s49, 1
          %s332 = smul.addr %s331, 16
          %s333 = scalar_lea.vmem [#allocation2], %s332
          %s334 = smul.u32 2, %s33
          %s336 = ssub.s32 256, 256
          %337 = vsyncadd %s330, %s336
          %s338 = smul.addr %s32, 4
          %s339 = sadd.s32 %s334, %s338
          %s340 = smul.addr %s339, 128
          %s341 = scalar_lea.hbm %s0, %s340
          %s342 = sshll.u32 %s333, 4
          %s343 = int_to_ptr.vmem [resolvable:$true] %s342
          %348 = dma.hbm_to_vmem [thread:$0]  %s341, 256, %s343, %s330, 128, 128, 8
        $region40: #{tpu_custom_call.1} parent=35 // pred_fallthru
          _
        // Predicated region
        $region41: #{tpu_custom_call.1} parent=35 // pred_check
          %p349 = pneg %p93
        $region42: #{tpu_custom_call.1} parent=35 // pred_check_branch
          %351 = sbr.rel (%p349) target = $region44
        $region43: #{tpu_custom_call.1} parent=35 // pred_region
          %s352 = sand.u32 %s25, 1
          %s353 = scalar_lea.sflag [#allocation6], %s352
          %s354 = sand.u32 %s83, 1
          %s355 = smul.addr %s354, 16
          %s356 = scalar_lea.vmem [#allocation5], %s355
          %s357 = ssub.s32 %s33, 1
          %p358 = scmp.gt.s32.totalorder %s357, 0
          %s359 = scalar_select %p358, %s357, 0
          %s360 = smul.u32 2, %s359
          %s362 = ssub.s32 256, 256
          %363 = vsyncadd %s353, %s362
          %s364 = smul.addr %s32, 4
          %s365 = sadd.s32 %s360, %s364
          %s366 = smul.addr %s365, 128
          %s367 = scalar_lea.hbm %s1, %s366
          %s368 = sshll.u32 %s356, 4
          %s369 = int_to_ptr.vmem [resolvable:$true] %s368
          %374 = dma.hbm_to_vmem [thread:$0]  %s367, 256, %s369, %s353, 128, 128, 8
        $region44: #{tpu_custom_call.1} parent=35 // pred_fallthru
          _
        // Predicated region
        $region45: #{tpu_custom_call.1} parent=35 // pred_check
          %p375 = pneg %p123
        $region46: #{tpu_custom_call.1} parent=35 // pred_check_branch
          %377 = sbr.rel (%p375) target = $region48
        $region47: #{tpu_custom_call.1} parent=35 // pred_region
          %s378 = sand.u32 %s25, 1
          %s379 = scalar_lea.sflag [#allocation6], %s378
          %s380 = sand.u32 %s113, 1
          %s381 = smul.addr %s380, 16
          %s382 = scalar_lea.vmem [#allocation7], %s381
          %s383 = sadd.s32 %s33, 1
          %s384 = smul.u32 2, %s383
          %s386 = ssub.s32 256, 256
          %387 = vsyncadd %s379, %s386
          %s388 = smul.addr %s32, 4
          %s389 = sadd.s32 %s384, %s388
          %s390 = smul.addr %s389, 128
          %s391 = scalar_lea.hbm %s2, %s390
          %s392 = sshll.u32 %s382, 4
          %s393 = int_to_ptr.vmem [resolvable:$true] %s392
          %398 = dma.hbm_to_vmem [thread:$0]  %s391, 256, %s393, %s379, 128, 128, 8
        $region48: #{tpu_custom_call.1} parent=35 // pred_fallthru
          _
      $region36: #{tpu_custom_call.1} parent=5 // pred_fallthru
        _
      %p399 = scmp.le.s32.totalorder 1, %s25
      %p400 = scmp.lt.s32.totalorder %s25, 3
      %p401 = pnand %p399, %p400
      %p402 = pneg %p401
      // Predicated region
      $region49: #{tpu_custom_call.1} parent=5 // pred_check
        _
      $region50: #{tpu_custom_call.1} parent=5 // pred_check_branch
        %404 = sbr.rel (%p401) target = $region52
      $region51: #{tpu_custom_call.1} parent=5 // pred_region
        %s405 = ssub.s32 %s25, 1
        %s406 = sand.u32 %s52, 1
        %s407 = scalar_lea.sflag [#allocation3], %s406
        %s408 = sand.u32 %s52, 1
        %s409 = smul.addr %s408, 16
        %s410 = scalar_lea.vmem [#allocation2], %s409
        // Predicated region
        $region53: #{tpu_custom_call.1} parent=51 // pred_check
          %p411 = pneg %p65
        $region54: #{tpu_custom_call.1} parent=51 // pred_check_branch
          %413 = sbr.rel (%p411) target = $region56
        $region55: #{tpu_custom_call.1} parent=51 // pred_region
          %414 = dma.done %s407, 256
        $region56: #{tpu_custom_call.1} parent=51 // pred_fallthru
          _
        %s415 = sand.u32 %s30, 1
        %s416 = scalar_lea.sflag [#allocation6], %s415
        %s417 = sand.u32 %s86, 1
        %s418 = smul.addr %s417, 16
        %s419 = scalar_lea.vmem [#allocation5], %s418
        // Predicated region
        $region57: #{tpu_custom_call.1} parent=51 // pred_check
          %p420 = pneg %p99
        $region58: #{tpu_custom_call.1} parent=51 // pred_check_branch
          %422 = sbr.rel (%p420) target = $region60
        $region59: #{tpu_custom_call.1} parent=51 // pred_region
          %423 = dma.done %s416, 256
        $region60: #{tpu_custom_call.1} parent=51 // pred_fallthru
          _
        %s424 = sand.u32 %s30, 1
        %s425 = scalar_lea.sflag [#allocation6], %s424
        %s426 = sand.u32 %s116, 1
        %s427 = smul.addr %s426, 16
        %s428 = scalar_lea.vmem [#allocation7], %s427
        // Predicated region
        $region61: #{tpu_custom_call.1} parent=51 // pred_check
          %p429 = pneg %p129
        $region62: #{tpu_custom_call.1} parent=51 // pred_check_branch
          %431 = sbr.rel (%p429) target = $region64
        $region63: #{tpu_custom_call.1} parent=51 // pred_region
          %432 = dma.done %s425, 256
        $region64: #{tpu_custom_call.1} parent=51 // pred_fallthru
          _
        // Predicated region
        $region65: #{tpu_custom_call.1} parent=51 // pred_check
          %p433 = pneg %p150
        $region66: #{tpu_custom_call.1} parent=51 // pred_check_branch
          %435 = sbr.rel (%p433) target = $region68
        $region67: #{tpu_custom_call.1} parent=51 // pred_region
          %436 = dma.done [#allocation9], 6144
        $region68: #{tpu_custom_call.1} parent=51 // pred_fallthru
          _
        // Predicated region
        $region69: #{tpu_custom_call.1} parent=51 // pred_check
          %p437 = pneg %p192
        $region70: #{tpu_custom_call.1} parent=51 // pred_check_branch
          %439 = sbr.rel (%p437) target = $region72
        $region71: #{tpu_custom_call.1} parent=51 // pred_region
          %440 = dma.done [#allocation9], 6144
        $region72: #{tpu_custom_call.1} parent=51 // pred_fallthru
          _
        // Predicated region
        $region73: #{tpu_custom_call.1} parent=51 // pred_check
          %p441 = pneg %p234
        $region74: #{tpu_custom_call.1} parent=51 // pred_check_branch
          %443 = sbr.rel (%p441) target = $region76
        $region75: #{tpu_custom_call.1} parent=51 // pred_region
          %444 = dma.done [#allocation12], 2048
        $region76: #{tpu_custom_call.1} parent=51 // pred_fallthru
          _
        %s445 = sand.u32 %s52, 1
        %s446 = scalar_lea.sflag [#allocation3], %s445
        %s447 = sand.u32 %s52, 1
        %s448 = smul.addr %s447, 16
        %s449 = scalar_lea.vmem [#allocation2], %s448
        %p450 = pneg %p65
        %p451 = pneg %p62
        %s452 = sand.u32 %s30, 1
        %s453 = scalar_lea.sflag [#allocation6], %s452
        %s454 = sand.u32 %s86, 1
        %s455 = smul.addr %s454, 16
        %s456 = scalar_lea.vmem [#allocation5], %s455
        %p457 = pneg %p99
        %p458 = pneg %p96
        %s459 = sand.u32 %s30, 1
        %s460 = scalar_lea.sflag [#allocation6], %s459
        %s461 = sand.u32 %s116, 1
        %s462 = smul.addr %s461, 16
        %s463 = scalar_lea.vmem [#allocation7], %s462
        %p464 = pneg %p129
        %p465 = pneg %p126
        %p466 = pneg %p150
        %p467 = pneg %p147
        %p468 = pneg %p171
        %p469 = pneg %p168
        %p470 = pneg %p192
        %p471 = pneg %p189
        %p472 = pneg %p213
        %p473 = pneg %p210
        %p474 = pneg %p234
        %p475 = pneg %p231
        %p476 = pneg %p262
        %p477 = pneg %p259
        %s478 = sand.u32 %s249, 1
        %s479 = scalar_lea.sflag [#allocation4], %s478
        %s480 = sand.u32 %s249, 1
        %s481 = smul.addr %s480, 16
        %s482 = scalar_lea.vmem [#allocation13], %s481
        %s483 = smul.u32 2, %s35
        %s484 = ssub.s32 %s35, 1
        %p485 = scmp.gt.s32.totalorder %s484, 0
        %s486 = scalar_select %p485, %s484, 0
        %s487 = smul.u32 2, %s486
        %s488 = sadd.s32 %s35, 1
        %s489 = smul.u32 2, %s488
        %s490 = smul.u32 2, %s35
        %v491 = vld [vmem:[%s410] sm:$0xff]
        %v492 = vld [vmem:[%s410 + $0x8] sm:$0xff]
        %v493 = vld [vmem:[%s419 + $0x8] sm:$0xff]
        %p494 = scmp.gt.s32.totalorder %s35, 0
        %s495 = scalar_select %p494, 1, 0
        %v496 = vstv %s495
        %vm497 = vcmp.eq.s32.totalorder %v496, 1
        %v498 = vsel %vm497, %v493, 0.0
        %v499 = vld [vmem:[%s428] sm:$0xff]
        %v500 = vld [vmem:[#allocation8] sm:$0xff]
        %v501 = vld [vmem:[#allocation8 + $0x8] sm:$0xff]
        %v502 = vld [vmem:[#allocation8 + $0x10] sm:$0xff]
        %v503 = vld [vmem:[#allocation8 + $0x18] sm:$0xff]
        %v504 = vld [vmem:[#allocation8 + $0x20] sm:$0xff]
        %v505 = vld [vmem:[#allocation8 + $0x28] sm:$0xff]
        %v506 = vld [vmem:[#allocation8 + $0x30] sm:$0xff]
        %v507 = vld [vmem:[#allocation8 + $0x38] sm:$0xff]
        %v508 = vld [vmem:[#allocation8 + $0x40] sm:$0xff]
        %v509 = vld [vmem:[#allocation8 + $0x48] sm:$0xff]
        %v510 = vld [vmem:[#allocation8 + $0x50] sm:$0xff]
        %v511 = vld [vmem:[#allocation8 + $0x58] sm:$0xff]
        %v512 = vld [vmem:[#allocation8 + $0x60] sm:$0xff]
        %v513 = vld [vmem:[#allocation8 + $0x68] sm:$0xff]
        %v514 = vld [vmem:[#allocation8 + $0x70] sm:$0xff]
        %v515 = vld [vmem:[#allocation8 + $0x78] sm:$0xff]
        %s516 = scalar_lea.vmem [#allocation8], 128
        %v517 = vld [vmem:[%s516] sm:$0xff]
        %v518 = vld [vmem:[%s516 + $0x8] sm:$0xff]
        %v519 = vld [vmem:[%s516 + $0x10] sm:$0xff]
        %v520 = vld [vmem:[%s516 + $0x18] sm:$0xff]
        %v521 = vld [vmem:[%s516 + $0x20] sm:$0xff]
        %v522 = vld [vmem:[%s516 + $0x28] sm:$0xff]
        %v523 = vld [vmem:[%s516 + $0x30] sm:$0xff]
        %v524 = vld [vmem:[%s516 + $0x38] sm:$0xff]
        %v525 = vld [vmem:[%s516 + $0x40] sm:$0xff]
        %v526 = vld [vmem:[%s516 + $0x48] sm:$0xff]
        %v527 = vld [vmem:[%s516 + $0x50] sm:$0xff]
        %v528 = vld [vmem:[%s516 + $0x58] sm:$0xff]
        %v529 = vld [vmem:[%s516 + $0x60] sm:$0xff]
        %v530 = vld [vmem:[%s516 + $0x68] sm:$0xff]
        %v531 = vld [vmem:[%s516 + $0x70] sm:$0xff]
        %v532 = vld [vmem:[%s516 + $0x78] sm:$0xff]
        %vm537 = vcmask 1040384
        %v538 = vrot.slane %v498, 7
        %v539 = vrot.slane %v491, 7
        %v540 = vsel %vm537, %v538, %v539
        %v541 = vrot.slane %v492, 7
        %v542 = vsel %vm537, %v539, %v541
        %v543 = vrot.slane %v499, 7
        %v544 = vsel %vm537, %v541, %v543
        %548 = vmatprep.subr.mxu0 0.0
        %549 = vmatpush1.msra.mxu0 %v532
        %550 = vmatprep.subr.mxu0 0.0
        %551 = vmatpush1.msra.mxu0 %v531
        %552 = vmatprep.subr.mxu0 0.0
        %553 = vmatpush1.msra.mxu0 %v530
        %554 = vmatprep.subr.mxu0 0.0
        %555 = vmatpush1.msra.mxu0 %v529
        %556 = vmatprep.subr.mxu0 0.0
        %557 = vmatpush1.msra.mxu0 %v528
        %558 = vmatprep.subr.mxu0 0.0
        %559 = vmatpush1.msra.mxu0 %v527
        %560 = vmatprep.subr.mxu0 0.0
        %561 = vmatpush1.msra.mxu0 %v526
        %562 = vmatprep.subr.mxu0 0.0
        %563 = vmatpush1.msra.mxu0 %v525
        %564 = vmatprep.subr.mxu0 0.0
        %565 = vmatpush1.msra.mxu0 %v524
        %566 = vmatprep.subr.mxu0 0.0
        %567 = vmatpush1.msra.mxu0 %v523
        %568 = vmatprep.subr.mxu0 0.0
        %569 = vmatpush1.msra.mxu0 %v522
        %570 = vmatprep.subr.mxu0 0.0
        %571 = vmatpush1.msra.mxu0 %v521
        %572 = vmatprep.subr.mxu0 0.0
        %573 = vmatpush1.msra.mxu0 %v520
        %574 = vmatprep.subr.mxu0 0.0
        %575 = vmatpush1.msra.mxu0 %v519
        %576 = vmatprep.subr.mxu0 0.0
        %577 = vmatpush1.msra.mxu0 %v518
        %578 = vmatprep.subr.mxu0 0.0
        %579 = vmatpush1.msra.mxu0 %v517
        %580 = vmatprep.subr.mxu0 0.0
        %581 = vmatpush2.msra.mxu0 0.0
        %582 = vmatprep.subr.mxu0 0.0
        %583 = vmatpush2.msra.mxu0 0.0
        %584 = vmatprep.subr.mxu0 0.0
        %585 = vmatpush2.msra.mxu0 0.0
        %586 = vmatprep.subr.mxu0 0.0
        %587 = vmatpush2.msra.mxu0 0.0
        %588 = vmatprep.subr.mxu0 0.0
        %589 = vmatpush2.msra.mxu0 0.0
        %590 = vmatprep.subr.mxu0 0.0
        %591 = vmatpush2.msra.mxu0 0.0
        %592 = vmatprep.subr.mxu0 0.0
        %593 = vmatpush2.msra.mxu0 0.0
        %594 = vmatprep.subr.mxu0 0.0
        %595 = vmatpush2.msra.mxu0 0.0
        %596 = vmatprep.subr.mxu0 0.0
        %597 = vmatpush2.msra.mxu0 0.0
        %598 = vmatprep.subr.mxu0 0.0
        %599 = vmatpush2.msra.mxu0 0.0
        %600 = vmatprep.subr.mxu0 0.0
        %601 = vmatpush2.msra.mxu0 0.0
        %602 = vmatprep.subr.mxu0 0.0
        %603 = vmatpush2.msra.mxu0 0.0
        %604 = vmatprep.subr.mxu0 0.0
        %605 = vmatpush2.msra.mxu0 0.0
        %606 = vmatprep.subr.mxu0 0.0
        %607 = vmatpush2.msra.mxu0 0.0
        %608 = vmatprep.subr.mxu0 0.0
        %609 = vmatpush2.msra.mxu0 0.0
        %610 = vmatprep.subr.mxu0 0.0
        %611 = vmatpush2.msra.mxu0 0.0
        %612 = vmatprep.mubr.f32.mxu0 0.0
        %613 = vmatmul.mubr.f32.gmra.mxu0 %v540
        %v614 = vpop.f32.mrf.mxu0
        %v615 = vadd.f32 0.0, %v614
        %v616 = vpop.f32.mrf.mxu0
        %617 = vmatprep.mubr.f32.mxu0 0.0
        %618 = vmatmul.mubr.f32.gmra.mxu0 %v542
        %v619 = vpop.f32.mrf.mxu0
        %v620 = vadd.f32 0.0, %v619
        %v621 = vpop.f32.mrf.mxu0
        %622 = vmatprep.mubr.f32.mxu0 0.0
        %623 = vmatmul.mubr.f32.gmra.mxu0 %v544
        %v624 = vpop.f32.mrf.mxu0
        %v625 = vadd.f32 0.0, %v624
        %v626 = vpop.f32.mrf.mxu0
        %627 = vdwg.mxu0
        %vm628 = vcmask 1041408
        %v629 = vrot.slane %v498, 6
        %v630 = vrot.slane %v491, 6
        %v631 = vsel %vm628, %v629, %v630
        %v632 = vrot.slane %v492, 6
        %v633 = vsel %vm628, %v630, %v632
        %637 = vmatprep.subr.mxu0 0.0
        %638 = vmatpush1.msra.mxu0 %v515
        %639 = vmatprep.subr.mxu0 0.0
        %640 = vmatpush1.msra.mxu0 %v514
        %641 = vmatprep.subr.mxu0 0.0
        %642 = vmatpush1.msra.mxu0 %v513
        %643 = vmatprep.subr.mxu0 0.0
        %644 = vmatpush1.msra.mxu0 %v512
        %645 = vmatprep.subr.mxu0 0.0
        %646 = vmatpush1.msra.mxu0 %v511
        %647 = vmatprep.subr.mxu0 0.0
        %648 = vmatpush1.msra.mxu0 %v510
        %649 = vmatprep.subr.mxu0 0.0
        %650 = vmatpush1.msra.mxu0 %v509
        %651 = vmatprep.subr.mxu0 0.0
        %652 = vmatpush1.msra.mxu0 %v508
        %653 = vmatprep.subr.mxu0 0.0
        %654 = vmatpush1.msra.mxu0 %v507
        %655 = vmatprep.subr.mxu0 0.0
        %656 = vmatpush1.msra.mxu0 %v506
        %657 = vmatprep.subr.mxu0 0.0
        %658 = vmatpush1.msra.mxu0 %v505
        %659 = vmatprep.subr.mxu0 0.0
        %660 = vmatpush1.msra.mxu0 %v504
        %661 = vmatprep.subr.mxu0 0.0
        %662 = vmatpush1.msra.mxu0 %v503
        %663 = vmatprep.subr.mxu0 0.0
        %664 = vmatpush1.msra.mxu0 %v502
        %665 = vmatprep.subr.mxu0 0.0
        %666 = vmatpush1.msra.mxu0 %v501
        %667 = vmatprep.subr.mxu0 0.0
        %668 = vmatpush1.msra.mxu0 %v500
        %669 = vmatprep.subr.mxu0 0.0
        %670 = vmatpush2.msra.mxu0 0.0
        %671 = vmatprep.subr.mxu0 0.0
        %672 = vmatpush2.msra.mxu0 0.0
        %673 = vmatprep.subr.mxu0 0.0
        %674 = vmatpush2.msra.mxu0 0.0
        %675 = vmatprep.subr.mxu0 0.0
        %676 = vmatpush2.msra.mxu0 0.0
        %677 = vmatprep.subr.mxu0 0.0
        %678 = vmatpush2.msra.mxu0 0.0
        %679 = vmatprep.subr.mxu0 0.0
        %680 = vmatpush2.msra.mxu0 0.0
        %681 = vmatprep.subr.mxu0 0.0
        %682 = vmatpush2.msra.mxu0 0.0
        %683 = vmatprep.subr.mxu0 0.0
        %684 = vmatpush2.msra.mxu0 0.0
        %685 = vmatprep.subr.mxu0 0.0
        %686 = vmatpush2.msra.mxu0 0.0
        %687 = vmatprep.subr.mxu0 0.0
        %688 = vmatpush2.msra.mxu0 0.0
        %689 = vmatprep.subr.mxu0 0.0
        %690 = vmatpush2.msra.mxu0 0.0
        %691 = vmatprep.subr.mxu0 0.0
        %692 = vmatpush2.msra.mxu0 0.0
        %693 = vmatprep.subr.mxu0 0.0
        %694 = vmatpush2.msra.mxu0 0.0
        %695 = vmatprep.subr.mxu0 0.0
        %696 = vmatpush2.msra.mxu0 0.0
        %697 = vmatprep.subr.mxu0 0.0
        %698 = vmatpush2.msra.mxu0 0.0
        %699 = vmatprep.subr.mxu0 0.0
        %700 = vmatpush2.msra.mxu0 0.0
        %701 = vmatprep.mubr.f32.mxu0 0.0
        %702 = vmatmul.mubr.f32.gmra.mxu0 %v631
        %v703 = vpop.f32.mrf.mxu0
        %v704 = vadd.f32 %v615, %v703
        %v705 = vpop.f32.mrf.mxu0
        %706 = vmatprep.mubr.f32.mxu0 0.0
        %707 = vmatmul.mubr.f32.gmra.mxu0 %v633
        %v708 = vpop.f32.mrf.mxu0
        %v709 = vadd.f32 %v620, %v708
        %v710 = vpop.f32.mrf.mxu0
        %711 = vmatprep.mubr.f32.mxu0 0.0
        %712 = vmatmul.mubr.f32.gmra.mxu0 %v632
        %v713 = vpop.f32.mrf.mxu0
        %v714 = vadd.f32 %v625, %v713
        %v715 = vpop.f32.mrf.mxu0
        %716 = vdwg.mxu0
        %s717 = scalar_lea.vmem [#allocation8], 256
        %v718 = vld [vmem:[%s717] sm:$0xff]
        %v719 = vld [vmem:[%s717 + $0x8] sm:$0xff]
        %v720 = vld [vmem:[%s717 + $0x10] sm:$0xff]
        %v721 = vld [vmem:[%s717 + $0x18] sm:$0xff]
        %v722 = vld [vmem:[%s717 + $0x20] sm:$0xff]
        %v723 = vld [vmem:[%s717 + $0x28] sm:$0xff]
        %v724 = vld [vmem:[%s717 + $0x30] sm:$0xff]
        %v725 = vld [vmem:[%s717 + $0x38] sm:$0xff]
        %v726 = vld [vmem:[%s717 + $0x40] sm:$0xff]
        %v727 = vld [vmem:[%s717 + $0x48] sm:$0xff]
        %v728 = vld [vmem:[%s717 + $0x50] sm:$0xff]
        %v729 = vld [vmem:[%s717 + $0x58] sm:$0xff]
        %v730 = vld [vmem:[%s717 + $0x60] sm:$0xff]
        %v731 = vld [vmem:[%s717 + $0x68] sm:$0xff]
        %v732 = vld [vmem:[%s717 + $0x70] sm:$0xff]
        %v733 = vld [vmem:[%s717 + $0x78] sm:$0xff]
        %734 = vmatprep.subr.mxu0 0.0
        %735 = vmatpush1.msra.mxu0 %v733
        %736 = vmatprep.subr.mxu0 0.0
        %737 = vmatpush1.msra.mxu0 %v732
        %738 = vmatprep.subr.mxu0 0.0
        %739 = vmatpush1.msra.mxu0 %v731
        %740 = vmatprep.subr.mxu0 0.0
        %741 = vmatpush1.msra.mxu0 %v730
        %742 = vmatprep.subr.mxu0 0.0
        %743 = vmatpush1.msra.mxu0 %v729
        %744 = vmatprep.subr.mxu0 0.0
        %745 = vmatpush1.msra.mxu0 %v728
        %746 = vmatprep.subr.mxu0 0.0
        %747 = vmatpush1.msra.mxu0 %v727
        %748 = vmatprep.subr.mxu0 0.0
        %749 = vmatpush1.msra.mxu0 %v726
        %750 = vmatprep.subr.mxu0 0.0
        %751 = vmatpush1.msra.mxu0 %v725
        %752 = vmatprep.subr.mxu0 0.0
        %753 = vmatpush1.msra.mxu0 %v724
        %754 = vmatprep.subr.mxu0 0.0
        %755 = vmatpush1.msra.mxu0 %v723
        %756 = vmatprep.subr.mxu0 0.0
        %757 = vmatpush1.msra.mxu0 %v722
        %758 = vmatprep.subr.mxu0 0.0
        %759 = vmatpush1.msra.mxu0 %v721
        %760 = vmatprep.subr.mxu0 0.0
        %761 = vmatpush1.msra.mxu0 %v720
        %762 = vmatprep.subr.mxu0 0.0
        %763 = vmatpush1.msra.mxu0 %v719
        %764 = vmatprep.subr.mxu0 0.0
        %765 = vmatpush1.msra.mxu0 %v718
        %766 = vmatprep.subr.mxu0 0.0
        %767 = vmatpush2.msra.mxu0 0.0
        %768 = vmatprep.subr.mxu0 0.0
        %769 = vmatpush2.msra.mxu0 0.0
        %770 = vmatprep.subr.mxu0 0.0
        %771 = vmatpush2.msra.mxu0 0.0
        %772 = vmatprep.subr.mxu0 0.0
        %773 = vmatpush2.msra.mxu0 0.0
        %774 = vmatprep.subr.mxu0 0.0
        %775 = vmatpush2.msra.mxu0 0.0
        %776 = vmatprep.subr.mxu0 0.0
        %777 = vmatpush2.msra.mxu0 0.0
        %778 = vmatprep.subr.mxu0 0.0
        %779 = vmatpush2.msra.mxu0 0.0
        %780 = vmatprep.subr.mxu0 0.0
        %781 = vmatpush2.msra.mxu0 0.0
        %782 = vmatprep.subr.mxu0 0.0
        %783 = vmatpush2.msra.mxu0 0.0
        %784 = vmatprep.subr.mxu0 0.0
        %785 = vmatpush2.msra.mxu0 0.0
        %786 = vmatprep.subr.mxu0 0.0
        %787 = vmatpush2.msra.mxu0 0.0
        %788 = vmatprep.subr.mxu0 0.0
        %789 = vmatpush2.msra.mxu0 0.0
        %790 = vmatprep.subr.mxu0 0.0
        %791 = vmatpush2.msra.mxu0 0.0
        %792 = vmatprep.subr.mxu0 0.0
        %793 = vmatpush2.msra.mxu0 0.0
        %794 = vmatprep.subr.mxu0 0.0
        %795 = vmatpush2.msra.mxu0 0.0
        %796 = vmatprep.subr.mxu0 0.0
        %797 = vmatpush2.msra.mxu0 0.0
        %798 = vmatprep.mubr.f32.mxu0 0.0
        %799 = vmatmul.mubr.f32.gmra.mxu0 %v491
        %v800 = vpop.f32.mrf.mxu0
        %v801 = vadd.f32 0.0, %v800
        %v802 = vpop.f32.mrf.mxu0
        %803 = vmatprep.mubr.f32.mxu0 0.0
        %804 = vmatmul.mubr.f32.gmra.mxu0 %v492
        %v805 = vpop.f32.mrf.mxu0
        %v806 = vadd.f32 0.0, %v805
        %v807 = vpop.f32.mrf.mxu0
        %808 = vmatprep.mubr.f32.mxu0 0.0
        %809 = vmatmul.mubr.f32.gmra.mxu0 %v499
        %v810 = vpop.f32.mrf.mxu0
        %v811 = vadd.f32 0.0, %v810
        %v812 = vpop.f32.mrf.mxu0
        %813 = vdwg.mxu0
        %v814 = vadd.f32 %v704, %v801
        %v815 = vadd.f32 %v709, %v806
        %v816 = vadd.f32 %v714, %v811
        %v817 = vld [vmem:[%s4] sm:$0x1]
        %v819 = vlaneseq
        %v820 = vshrl.u32 %v819, 7
        %v821 = vsub.s32 0, %v820
        %v822 = vrot.slane %v817, %v821
        %v824 = vadd.f32 %v814, %v822
        %v825 = vadd.f32 %v815, %v822
        %v826 = vadd.f32 %v816, %v822
        %v827 = vmax.f32 %v824, 0.0
        %v828 = vmax.f32 %v825, 0.0
        %v829 = vmax.f32 %v826, 0.0
        %s830 = smul.u32 %s35, 16
        %s831 = ssub.s32 %s830, 1
        %v832 = vlaneseq
        %v833 = vshrl.u32 %v832, 7
        %v834 = vadd.s32 %v833, 8
        %v835 = vadd.s32 %v833, 16
        %v836 = vstv %s831
        %v837 = vadd.s32 %v836, %v833
        %v838 = vadd.s32 %v836, %v834
        %v839 = vadd.s32 %v836, %v835
        %vm840 = vcmp.ge.s32.totalorder %v837, 0
        %vm841 = vcmp.ge.s32.totalorder %v838, 0
        %vm842 = vcmp.ge.s32.totalorder %v839, 0
        %vm843 = vcmp.lt.s32.totalorder %v837, 16
        %vm844 = vcmp.lt.s32.totalorder %v838, 16
        %vm845 = vcmp.lt.s32.totalorder %v839, 16
        %vm846 = vmand %vm840, %vm843
        %vm847 = vmand %vm841, %vm844
        %vm848 = vmand %vm842, %vm845
        %v849 = vsel %vm846, 1, 0
        %v850 = vsel %vm847, 1, 0
        %v851 = vsel %vm848, 1, 0
        %vm852 = vcmp.eq.s32.totalorder %v849, 1
        %vm853 = vcmp.eq.s32.totalorder %v850, 1
        %vm854 = vcmp.eq.s32.totalorder %v851, 1
        %v855 = vsel %vm852, %v827, 0.0
        %v856 = vsel %vm853, %v828, 0.0
        %v857 = vsel %vm854, %v829, 0.0
        %v858 = vld [vmem:[#allocation10] sm:$0xff]
        %v859 = vld [vmem:[#allocation10 + $0x8] sm:$0xff]
        %v860 = vld [vmem:[#allocation10 + $0x10] sm:$0xff]
        %v861 = vld [vmem:[#allocation10 + $0x18] sm:$0xff]
        %v862 = vld [vmem:[#allocation10 + $0x20] sm:$0xff]
        %v863 = vld [vmem:[#allocation10 + $0x28] sm:$0xff]
        %v864 = vld [vmem:[#allocation10 + $0x30] sm:$0xff]
        %v865 = vld [vmem:[#allocation10 + $0x38] sm:$0xff]
        %v866 = vld [vmem:[#allocation10 + $0x40] sm:$0xff]
        %v867 = vld [vmem:[#allocation10 + $0x48] sm:$0xff]
        %v868 = vld [vmem:[#allocation10 + $0x50] sm:$0xff]
        %v869 = vld [vmem:[#allocation10 + $0x58] sm:$0xff]
        %v870 = vld [vmem:[#allocation10 + $0x60] sm:$0xff]
        %v871 = vld [vmem:[#allocation10 + $0x68] sm:$0xff]
        %v872 = vld [vmem:[#allocation10 + $0x70] sm:$0xff]
        %v873 = vld [vmem:[#allocation10 + $0x78] sm:$0xff]
        %s874 = scalar_lea.vmem [#allocation10], 128
        %v875 = vld [vmem:[%s874] sm:$0xff]
        %v876 = vld [vmem:[%s874 + $0x8] sm:$0xff]
        %v877 = vld [vmem:[%s874 + $0x10] sm:$0xff]
        %v878 = vld [vmem:[%s874 + $0x18] sm:$0xff]
        %v879 = vld [vmem:[%s874 + $0x20] sm:$0xff]
        %v880 = vld [vmem:[%s874 + $0x28] sm:$0xff]
        %v881 = vld [vmem:[%s874 + $0x30] sm:$0xff]
        %v882 = vld [vmem:[%s874 + $0x38] sm:$0xff]
        %v883 = vld [vmem:[%s874 + $0x40] sm:$0xff]
        %v884 = vld [vmem:[%s874 + $0x48] sm:$0xff]
        %v885 = vld [vmem:[%s874 + $0x50] sm:$0xff]
        %v886 = vld [vmem:[%s874 + $0x58] sm:$0xff]
        %v887 = vld [vmem:[%s874 + $0x60] sm:$0xff]
        %v888 = vld [vmem:[%s874 + $0x68] sm:$0xff]
        %v889 = vld [vmem:[%s874 + $0x70] sm:$0xff]
        %v890 = vld [vmem:[%s874 + $0x78] sm:$0xff]
        %vm894 = vcmask 1046528
        %v895 = vrot.slane %v855, 1
        %v896 = vrot.slane %v856, 1
        %v897 = vsel %vm894, %v895, %v896
        %v898 = vrot.slane %v857, 1
        %v899 = vsel %vm894, %v896, %v898
        %902 = vmatprep.subr.mxu0 0.0
        %903 = vmatpush1.msra.mxu0 %v890
        %904 = vmatprep.subr.mxu0 0.0
        %905 = vmatpush1.msra.mxu0 %v889
        %906 = vmatprep.subr.mxu0 0.0
        %907 = vmatpush1.msra.mxu0 %v888
        %908 = vmatprep.subr.mxu0 0.0
        %909 = vmatpush1.msra.mxu0 %v887
        %910 = vmatprep.subr.mxu0 0.0
        %911 = vmatpush1.msra.mxu0 %v886
        %912 = vmatprep.subr.mxu0 0.0
        %913 = vmatpush1.msra.mxu0 %v885
        %914 = vmatprep.subr.mxu0 0.0
        %915 = vmatpush1.msra.mxu0 %v884
        %916 = vmatprep.subr.mxu0 0.0
        %917 = vmatpush1.msra.mxu0 %v883
        %918 = vmatprep.subr.mxu0 0.0
        %919 = vmatpush1.msra.mxu0 %v882
        %920 = vmatprep.subr.mxu0 0.0
        %921 = vmatpush1.msra.mxu0 %v881
        %922 = vmatprep.subr.mxu0 0.0
        %923 = vmatpush1.msra.mxu0 %v880
        %924 = vmatprep.subr.mxu0 0.0
        %925 = vmatpush1.msra.mxu0 %v879
        %926 = vmatprep.subr.mxu0 0.0
        %927 = vmatpush1.msra.mxu0 %v878
        %928 = vmatprep.subr.mxu0 0.0
        %929 = vmatpush1.msra.mxu0 %v877
        %930 = vmatprep.subr.mxu0 0.0
        %931 = vmatpush1.msra.mxu0 %v876
        %932 = vmatprep.subr.mxu0 0.0
        %933 = vmatpush1.msra.mxu0 %v875
        %934 = vmatprep.subr.mxu0 0.0
        %935 = vmatpush2.msra.mxu0 0.0
        %936 = vmatprep.subr.mxu0 0.0
        %937 = vmatpush2.msra.mxu0 0.0
        %938 = vmatprep.subr.mxu0 0.0
        %939 = vmatpush2.msra.mxu0 0.0
        %940 = vmatprep.subr.mxu0 0.0
        %941 = vmatpush2.msra.mxu0 0.0
        %942 = vmatprep.subr.mxu0 0.0
        %943 = vmatpush2.msra.mxu0 0.0
        %944 = vmatprep.subr.mxu0 0.0
        %945 = vmatpush2.msra.mxu0 0.0
        %946 = vmatprep.subr.mxu0 0.0
        %947 = vmatpush2.msra.mxu0 0.0
        %948 = vmatprep.subr.mxu0 0.0
        %949 = vmatpush2.msra.mxu0 0.0
        %950 = vmatprep.subr.mxu0 0.0
        %951 = vmatpush2.msra.mxu0 0.0
        %952 = vmatprep.subr.mxu0 0.0
        %953 = vmatpush2.msra.mxu0 0.0
        %954 = vmatprep.subr.mxu0 0.0
        %955 = vmatpush2.msra.mxu0 0.0
        %956 = vmatprep.subr.mxu0 0.0
        %957 = vmatpush2.msra.mxu0 0.0
        %958 = vmatprep.subr.mxu0 0.0
        %959 = vmatpush2.msra.mxu0 0.0
        %960 = vmatprep.subr.mxu0 0.0
        %961 = vmatpush2.msra.mxu0 0.0
        %962 = vmatprep.subr.mxu0 0.0
        %963 = vmatpush2.msra.mxu0 0.0
        %964 = vmatprep.subr.mxu0 0.0
        %965 = vmatpush2.msra.mxu0 0.0
        %966 = vmatprep.mubr.f32.mxu0 0.0
        %967 = vmatmul.mubr.f32.gmra.mxu0 %v897
        %v968 = vpop.f32.mrf.mxu0
        %v969 = vadd.f32 0.0, %v968
        %v970 = vpop.f32.mrf.mxu0
        %971 = vmatprep.mubr.f32.mxu0 0.0
        %972 = vmatmul.mubr.f32.gmra.mxu0 %v899
        %v973 = vpop.f32.mrf.mxu0
        %v974 = vadd.f32 0.0, %v973
        %v975 = vpop.f32.mrf.mxu0
        %976 = vdwg.mxu0
        %977 = vmatprep.subr.mxu0 0.0
        %978 = vmatpush1.msra.mxu0 %v873
        %979 = vmatprep.subr.mxu0 0.0
        %980 = vmatpush1.msra.mxu0 %v872
        %981 = vmatprep.subr.mxu0 0.0
        %982 = vmatpush1.msra.mxu0 %v871
        %983 = vmatprep.subr.mxu0 0.0
        %984 = vmatpush1.msra.mxu0 %v870
        %985 = vmatprep.subr.mxu0 0.0
        %986 = vmatpush1.msra.mxu0 %v869
        %987 = vmatprep.subr.mxu0 0.0
        %988 = vmatpush1.msra.mxu0 %v868
        %989 = vmatprep.subr.mxu0 0.0
        %990 = vmatpush1.msra.mxu0 %v867
        %991 = vmatprep.subr.mxu0 0.0
        %992 = vmatpush1.msra.mxu0 %v866
        %993 = vmatprep.subr.mxu0 0.0
        %994 = vmatpush1.msra.mxu0 %v865
        %995 = vmatprep.subr.mxu0 0.0
        %996 = vmatpush1.msra.mxu0 %v864
        %997 = vmatprep.subr.mxu0 0.0
        %998 = vmatpush1.msra.mxu0 %v863
        %999 = vmatprep.subr.mxu0 0.0
        %1000 = vmatpush1.msra.mxu0 %v862
        %1001 = vmatprep.subr.mxu0 0.0
        %1002 = vmatpush1.msra.mxu0 %v861
        %1003 = vmatprep.subr.mxu0 0.0
        %1004 = vmatpush1.msra.mxu0 %v860
        %1005 = vmatprep.subr.mxu0 0.0
        %1006 = vmatpush1.msra.mxu0 %v859
        %1007 = vmatprep.subr.mxu0 0.0
        %1008 = vmatpush1.msra.mxu0 %v858
        %1009 = vmatprep.subr.mxu0 0.0
        %1010 = vmatpush2.msra.mxu0 0.0
        %1011 = vmatprep.subr.mxu0 0.0
        %1012 = vmatpush2.msra.mxu0 0.0
        %1013 = vmatprep.subr.mxu0 0.0
        %1014 = vmatpush2.msra.mxu0 0.0
        %1015 = vmatprep.subr.mxu0 0.0
        %1016 = vmatpush2.msra.mxu0 0.0
        %1017 = vmatprep.subr.mxu0 0.0
        %1018 = vmatpush2.msra.mxu0 0.0
        %1019 = vmatprep.subr.mxu0 0.0
        %1020 = vmatpush2.msra.mxu0 0.0
        %1021 = vmatprep.subr.mxu0 0.0
        %1022 = vmatpush2.msra.mxu0 0.0
        %1023 = vmatprep.subr.mxu0 0.0
        %1024 = vmatpush2.msra.mxu0 0.0
        %1025 = vmatprep.subr.mxu0 0.0
        %1026 = vmatpush2.msra.mxu0 0.0
        %1027 = vmatprep.subr.mxu0 0.0
        %1028 = vmatpush2.msra.mxu0 0.0
        %1029 = vmatprep.subr.mxu0 0.0
        %1030 = vmatpush2.msra.mxu0 0.0
        %1031 = vmatprep.subr.mxu0 0.0
        %1032 = vmatpush2.msra.mxu0 0.0
        %1033 = vmatprep.subr.mxu0 0.0
        %1034 = vmatpush2.msra.mxu0 0.0
        %1035 = vmatprep.subr.mxu0 0.0
        %1036 = vmatpush2.msra.mxu0 0.0
        %1037 = vmatprep.subr.mxu0 0.0
        %1038 = vmatpush2.msra.mxu0 0.0
        %1039 = vmatprep.subr.mxu0 0.0
        %1040 = vmatpush2.msra.mxu0 0.0
        %1041 = vmatprep.mubr.f32.mxu0 0.0
        %1042 = vmatmul.mubr.f32.gmra.mxu0 %v855
        %v1043 = vpop.f32.mrf.mxu0
        %v1044 = vadd.f32 %v969, %v1043
        %v1045 = vpop.f32.mrf.mxu0
        %1046 = vmatprep.mubr.f32.mxu0 0.0
        %1047 = vmatmul.mubr.f32.gmra.mxu0 %v856
        %v1048 = vpop.f32.mrf.mxu0
        %v1049 = vadd.f32 %v974, %v1048
        %v1050 = vpop.f32.mrf.mxu0
        %1051 = vdwg.mxu0
        %s1052 = scalar_lea.vmem [#allocation10], 256
        %v1053 = vld [vmem:[%s1052] sm:$0xff]
        %v1054 = vld [vmem:[%s1052 + $0x8] sm:$0xff]
        %v1055 = vld [vmem:[%s1052 + $0x10] sm:$0xff]
        %v1056 = vld [vmem:[%s1052 + $0x18] sm:$0xff]
        %v1057 = vld [vmem:[%s1052 + $0x20] sm:$0xff]
        %v1058 = vld [vmem:[%s1052 + $0x28] sm:$0xff]
        %v1059 = vld [vmem:[%s1052 + $0x30] sm:$0xff]
        %v1060 = vld [vmem:[%s1052 + $0x38] sm:$0xff]
        %v1061 = vld [vmem:[%s1052 + $0x40] sm:$0xff]
        %v1062 = vld [vmem:[%s1052 + $0x48] sm:$0xff]
        %v1063 = vld [vmem:[%s1052 + $0x50] sm:$0xff]
        %v1064 = vld [vmem:[%s1052 + $0x58] sm:$0xff]
        %v1065 = vld [vmem:[%s1052 + $0x60] sm:$0xff]
        %v1066 = vld [vmem:[%s1052 + $0x68] sm:$0xff]
        %v1067 = vld [vmem:[%s1052 + $0x70] sm:$0xff]
        %v1068 = vld [vmem:[%s1052 + $0x78] sm:$0xff]
        %vm1069 = vcmask 1045504
        %v1070 = vrot.slane %v855, 2
        %v1071 = vrot.slane %v856, 2
        %v1072 = vsel %vm1069, %v1070, %v1071
        %v1073 = vrot.slane %v857, 2
        %v1074 = vsel %vm1069, %v1071, %v1073
        %1077 = vmatprep.subr.mxu0 0.0
        %1078 = vmatpush1.msra.mxu0 %v1068
        %1079 = vmatprep.subr.mxu0 0.0
        %1080 = vmatpush1.msra.mxu0 %v1067
        %1081 = vmatprep.subr.mxu0 0.0
        %1082 = vmatpush1.msra.mxu0 %v1066
        %1083 = vmatprep.subr.mxu0 0.0
        %1084 = vmatpush1.msra.mxu0 %v1065
        %1085 = vmatprep.subr.mxu0 0.0
        %1086 = vmatpush1.msra.mxu0 %v1064
        %1087 = vmatprep.subr.mxu0 0.0
        %1088 = vmatpush1.msra.mxu0 %v1063
        %1089 = vmatprep.subr.mxu0 0.0
        %1090 = vmatpush1.msra.mxu0 %v1062
        %1091 = vmatprep.subr.mxu0 0.0
        %1092 = vmatpush1.msra.mxu0 %v1061
        %1093 = vmatprep.subr.mxu0 0.0
        %1094 = vmatpush1.msra.mxu0 %v1060
        %1095 = vmatprep.subr.mxu0 0.0
        %1096 = vmatpush1.msra.mxu0 %v1059
        %1097 = vmatprep.subr.mxu0 0.0
        %1098 = vmatpush1.msra.mxu0 %v1058
        %1099 = vmatprep.subr.mxu0 0.0
        %1100 = vmatpush1.msra.mxu0 %v1057
        %1101 = vmatprep.subr.mxu0 0.0
        %1102 = vmatpush1.msra.mxu0 %v1056
        %1103 = vmatprep.subr.mxu0 0.0
        %1104 = vmatpush1.msra.mxu0 %v1055
        %1105 = vmatprep.subr.mxu0 0.0
        %1106 = vmatpush1.msra.mxu0 %v1054
        %1107 = vmatprep.subr.mxu0 0.0
        %1108 = vmatpush1.msra.mxu0 %v1053
        %1109 = vmatprep.subr.mxu0 0.0
        %1110 = vmatpush2.msra.mxu0 0.0
        %1111 = vmatprep.subr.mxu0 0.0
        %1112 = vmatpush2.msra.mxu0 0.0
        %1113 = vmatprep.subr.mxu0 0.0
        %1114 = vmatpush2.msra.mxu0 0.0
        %1115 = vmatprep.subr.mxu0 0.0
        %1116 = vmatpush2.msra.mxu0 0.0
        %1117 = vmatprep.subr.mxu0 0.0
        %1118 = vmatpush2.msra.mxu0 0.0
        %1119 = vmatprep.subr.mxu0 0.0
        %1120 = vmatpush2.msra.mxu0 0.0
        %1121 = vmatprep.subr.mxu0 0.0
        %1122 = vmatpush2.msra.mxu0 0.0
        %1123 = vmatprep.subr.mxu0 0.0
        %1124 = vmatpush2.msra.mxu0 0.0
        %1125 = vmatprep.subr.mxu0 0.0
        %1126 = vmatpush2.msra.mxu0 0.0
        %1127 = vmatprep.subr.mxu0 0.0
        %1128 = vmatpush2.msra.mxu0 0.0
        %1129 = vmatprep.subr.mxu0 0.0
        %1130 = vmatpush2.msra.mxu0 0.0
        %1131 = vmatprep.subr.mxu0 0.0
        %1132 = vmatpush2.msra.mxu0 0.0
        %1133 = vmatprep.subr.mxu0 0.0
        %1134 = vmatpush2.msra.mxu0 0.0
        %1135 = vmatprep.subr.mxu0 0.0
        %1136 = vmatpush2.msra.mxu0 0.0
        %1137 = vmatprep.subr.mxu0 0.0
        %1138 = vmatpush2.msra.mxu0 0.0
        %1139 = vmatprep.subr.mxu0 0.0
        %1140 = vmatpush2.msra.mxu0 0.0
        %1141 = vmatprep.mubr.f32.mxu0 0.0
        %1142 = vmatmul.mubr.f32.gmra.mxu0 %v1072
        %v1143 = vpop.f32.mrf.mxu0
        %v1144 = vadd.f32 0.0, %v1143
        %v1145 = vpop.f32.mrf.mxu0
        %1146 = vmatprep.mubr.f32.mxu0 0.0
        %1147 = vmatmul.mubr.f32.gmra.mxu0 %v1074
        %v1148 = vpop.f32.mrf.mxu0
        %v1149 = vadd.f32 0.0, %v1148
        %v1150 = vpop.f32.mrf.mxu0
        %1151 = vdwg.mxu0
        %v1152 = vadd.f32 %v1044, %v1144
        %v1153 = vadd.f32 %v1049, %v1149
        %v1154 = vld [vmem:[%s6] sm:$0x1]
        %v1156 = vlaneseq
        %v1157 = vshrl.u32 %v1156, 7
        %v1158 = vsub.s32 0, %v1157
        %v1159 = vrot.slane %v1154, %v1158
        %v1161 = vadd.f32 %v1152, %v1159
        %v1162 = vadd.f32 %v1153, %v1159
        %v1163 = vmax.f32 %v1161, 0.0
        %v1164 = vmax.f32 %v1162, 0.0
        %v1165 = vld [vmem:[#allocation11] sm:$0xff]
        %v1166 = vld [vmem:[#allocation11 + $0x8] sm:$0xff]
        %v1167 = vld [vmem:[#allocation11 + $0x10] sm:$0xff]
        %v1168 = vld [vmem:[#allocation11 + $0x18] sm:$0xff]
        %v1169 = vld [vmem:[#allocation11 + $0x20] sm:$0xff]
        %v1170 = vld [vmem:[#allocation11 + $0x28] sm:$0xff]
        %v1171 = vld [vmem:[#allocation11 + $0x30] sm:$0xff]
        %v1172 = vld [vmem:[#allocation11 + $0x38] sm:$0xff]
        %v1173 = vld [vmem:[#allocation11 + $0x40] sm:$0xff]
        %v1174 = vld [vmem:[#allocation11 + $0x48] sm:$0xff]
        %v1175 = vld [vmem:[#allocation11 + $0x50] sm:$0xff]
        %v1176 = vld [vmem:[#allocation11 + $0x58] sm:$0xff]
        %v1177 = vld [vmem:[#allocation11 + $0x60] sm:$0xff]
        %v1178 = vld [vmem:[#allocation11 + $0x68] sm:$0xff]
        %v1179 = vld [vmem:[#allocation11 + $0x70] sm:$0xff]
        %v1180 = vld [vmem:[#allocation11 + $0x78] sm:$0xff]
        %1181 = vmatprep.subr.mxu0 0.0
        %1182 = vmatpush1.msra.mxu0 %v1180
        %1183 = vmatprep.subr.mxu0 0.0
        %1184 = vmatpush1.msra.mxu0 %v1179
        %1185 = vmatprep.subr.mxu0 0.0
        %1186 = vmatpush1.msra.mxu0 %v1178
        %1187 = vmatprep.subr.mxu0 0.0
        %1188 = vmatpush1.msra.mxu0 %v1177
        %1189 = vmatprep.subr.mxu0 0.0
        %1190 = vmatpush1.msra.mxu0 %v1176
        %1191 = vmatprep.subr.mxu0 0.0
        %1192 = vmatpush1.msra.mxu0 %v1175
        %1193 = vmatprep.subr.mxu0 0.0
        %1194 = vmatpush1.msra.mxu0 %v1174
        %1195 = vmatprep.subr.mxu0 0.0
        %1196 = vmatpush1.msra.mxu0 %v1173
        %1197 = vmatprep.subr.mxu0 0.0
        %1198 = vmatpush1.msra.mxu0 %v1172
        %1199 = vmatprep.subr.mxu0 0.0
        %1200 = vmatpush1.msra.mxu0 %v1171
        %1201 = vmatprep.subr.mxu0 0.0
        %1202 = vmatpush1.msra.mxu0 %v1170
        %1203 = vmatprep.subr.mxu0 0.0
        %1204 = vmatpush1.msra.mxu0 %v1169
        %1205 = vmatprep.subr.mxu0 0.0
        %1206 = vmatpush1.msra.mxu0 %v1168
        %1207 = vmatprep.subr.mxu0 0.0
        %1208 = vmatpush1.msra.mxu0 %v1167
        %1209 = vmatprep.subr.mxu0 0.0
        %1210 = vmatpush1.msra.mxu0 %v1166
        %1211 = vmatprep.subr.mxu0 0.0
        %1212 = vmatpush1.msra.mxu0 %v1165
        %1213 = vmatprep.subr.mxu0 0.0
        %1214 = vmatpush2.msra.mxu0 0.0
        %1215 = vmatprep.subr.mxu0 0.0
        %1216 = vmatpush2.msra.mxu0 0.0
        %1217 = vmatprep.subr.mxu0 0.0
        %1218 = vmatpush2.msra.mxu0 0.0
        %1219 = vmatprep.subr.mxu0 0.0
        %1220 = vmatpush2.msra.mxu0 0.0
        %1221 = vmatprep.subr.mxu0 0.0
        %1222 = vmatpush2.msra.mxu0 0.0
        %1223 = vmatprep.subr.mxu0 0.0
        %1224 = vmatpush2.msra.mxu0 0.0
        %1225 = vmatprep.subr.mxu0 0.0
        %1226 = vmatpush2.msra.mxu0 0.0
        %1227 = vmatprep.subr.mxu0 0.0
        %1228 = vmatpush2.msra.mxu0 0.0
        %1229 = vmatprep.subr.mxu0 0.0
        %1230 = vmatpush2.msra.mxu0 0.0
        %1231 = vmatprep.subr.mxu0 0.0
        %1232 = vmatpush2.msra.mxu0 0.0
        %1233 = vmatprep.subr.mxu0 0.0
        %1234 = vmatpush2.msra.mxu0 0.0
        %1235 = vmatprep.subr.mxu0 0.0
        %1236 = vmatpush2.msra.mxu0 0.0
        %1237 = vmatprep.subr.mxu0 0.0
        %1238 = vmatpush2.msra.mxu0 0.0
        %1239 = vmatprep.subr.mxu0 0.0
        %1240 = vmatpush2.msra.mxu0 0.0
        %1241 = vmatprep.subr.mxu0 0.0
        %1242 = vmatpush2.msra.mxu0 0.0
        %1243 = vmatprep.subr.mxu0 0.0
        %1244 = vmatpush2.msra.mxu0 0.0
        %1245 = vmatprep.mubr.f32.mxu0 0.0
        %1246 = vmatmul.mubr.f32.gmra.mxu0 %v491
        %v1247 = vpop.f32.mrf.mxu0
        %v1248 = vadd.f32 0.0, %v1247
        %v1249 = vpop.f32.mrf.mxu0
        %1250 = vmatprep.mubr.f32.mxu0 0.0
        %1251 = vmatmul.mubr.f32.gmra.mxu0 %v492
        %v1252 = vpop.f32.mrf.mxu0
        %v1253 = vadd.f32 0.0, %v1252
        %v1254 = vpop.f32.mrf.mxu0
        %1255 = vdwg.mxu0
        %v1256 = vadd.f32 %v1163, %v1248
        %v1257 = vadd.f32 %v1164, %v1253
        %1258 = vst [vmem:[%s482] sm:$0xff] %v1256
        %1259 = vst [vmem:[%s482 + $0x8] sm:$0xff] %v1257
        %s1260 = sand.u32 %s249, 1
        %s1261 = scalar_lea.sflag [#allocation4], %s1260
        %s1262 = sand.u32 %s249, 1
        %s1263 = smul.addr %s1262, 16
        %s1264 = scalar_lea.vmem [#allocation13], %s1263
        // Predicated region
        $region77: #{tpu_custom_call.1} parent=51 // pred_check
          %p1265 = pneg %p259
        $region78: #{tpu_custom_call.1} parent=51 // pred_check_branch
          %1267 = sbr.rel (%p1265) target = $region80
        $region79: #{tpu_custom_call.1} parent=51 // pred_region
          %s1268 = smul.u32 2, %s35
          %s1270 = ssub.s32 256, 256
          %1271 = vsyncadd %s1261, %s1270
          %s1272 = smul.addr %s34, 2
          %s1273 = sadd.s32 %s1268, %s1272
          %s1274 = smul.addr %s1273, 128
          %s1275 = scalar_lea.hbm %s8, %s1274
          %s1276 = sshll.u32 %s1264, 4
          %s1277 = int_to_ptr.vmem [resolvable:$true] %s1276
          %1282 = dma.vmem_to_hbm [thread:$0]  %s1277, 256, %s1275, %s1261, 128, 128, 8
        $region80: #{tpu_custom_call.1} parent=51 // pred_fallthru
          _
      $region52: #{tpu_custom_call.1} parent=5 // pred_fallthru
        _
      %p1283 = scmp.le.s32.totalorder 2, %s25
      // Predicated region
      $region81: #{tpu_custom_call.1} parent=5 // pred_check
        %p1284 = pneg %p1283
      $region82: #{tpu_custom_call.1} parent=5 // pred_check_branch
        %1286 = sbr.rel (%p1284) target = $region84
      $region83: #{tpu_custom_call.1} parent=5 // pred_region
        %s1287 = ssub.s32 %s25, 2
        // Predicated region
        $region85: #{tpu_custom_call.1} parent=83 // pred_check
          %p1288 = pneg %p265
        $region86: #{tpu_custom_call.1} parent=83 // pred_check_branch
          %1290 = sbr.rel (%p1288) target = $region88
        $region87: #{tpu_custom_call.1} parent=83 // pred_region
          %s1291 = sand.u32 %s250, 1
          %s1292 = scalar_lea.sflag [#allocation4], %s1291
          %s1293 = sand.u32 %s250, 1
          %s1294 = smul.addr %s1293, 16
          %s1295 = scalar_lea.vmem [#allocation13], %s1294
          %1296 = dma.done %s1292, 256
        $region88: #{tpu_custom_call.1} parent=83 // pred_fallthru
          _
      $region84: #{tpu_custom_call.1} parent=5 // pred_fallthru
        _
    $region6: #{tpu_custom_call.1} parent=1 // loop_footer
      %s29 = sadd.s32 1, %s25
    $region7: #{tpu_custom_call.1} parent=1 // loop_footer_branch
      %24 = sbr.rel target = $region3
    $region8: #{tpu_custom_call.1} parent=1 // loop_exit
      _
    %1297 = vsyncpa [#allocation3], 1
    %s1298 = scalar_lea.sflag [#allocation3], 1
    %1299 = vsyncpa %s1298, 1
    %1300 = vsyncpa [#allocation6], 1
    %s1301 = scalar_lea.sflag [#allocation6], 1
    %1302 = vsyncpa %s1301, 1
    %1303 = vsyncpa [#allocation9], 1
    %1304 = vsyncpa [#allocation12], 1
    %1305 = vsyncpa [#allocation4], 1
    %s1306 = scalar_lea.sflag [#allocation4], 1
    %1307 = vsyncpa %s1306, 1

</llo_original>
